<compile_context>
chip_gen: v5e
topology: v5e:2x2
jax: 0.10.0
libtpu: 0.0.40
codegen_flags: <defaults>
</compile_context>

<pallas_src>
import functools
import math

import jax
import jax.numpy as jnp
import numpy as np
from jax.experimental import pallas as pl
from jax.experimental.pallas import tpu as pltpu


def _pe_kernel(yemb_ref, xemb_ref, invf_ref, phase_ref, out_ref, *, dim: int):
    # yemb_ref / xemb_ref : (1, TS)    f32  fully prepared y/x embeds per position
    # invf_ref / phase_ref: (dim, 1)   f32  1/freq and {0, pi/2, 0, pi/2, ...}
    # out_ref             : (2*dim, TS)     -> [pos_y | pos_x] along sublanes
    ts = out_ref.shape[-1]

    # Hoist the column -> full-lane splats once; reused by both halves
    # (JAX does not CSE broadcast_in_dim).
    inv_f = jnp.broadcast_to(invf_ref[...], (dim, ts))
    phase = jnp.broadcast_to(phase_ref[...], (dim, ts))

    # cos(t) == sin(t + pi/2): one transcendental per output element.
    # y half then x half: halves the live (dim, TS) temporaries.
    out_ref[:dim, :] = jnp.sin(yemb_ref[...] * inv_f + phase).astype(out_ref.dtype)
    out_ref[dim:, :] = jnp.sin(xemb_ref[...] * inv_f + phase).astype(out_ref.dtype)


def _choose_spatial_tile(hw: int, batch: int, target: int = 2048) -> int:
    """Lane tile for the flattened spatial axis.

    Always a multiple of 128 (so a ragged final tile is legal and masked by
    Pallas), at most `target` lanes (block stays ~1-2 MiB -> fits v7x VMEM with
    double buffering), shrunk when possible so batch * n_tiles >= 4 (both v7x
    TensorCores get work even at small batch)."""
    if hw <= 128:
        return hw                           # single full-extent block
    n_chunks = (hw + 127) // 128            # ceil in 128-lane chunks
    k = min(max(target // 128, 1), n_chunks)
    want_tiles = max(1, (4 + batch - 1) // batch)
    while k > 1 and (n_chunks + k - 1) // k < want_tiles:
        k = max(1, k // 2)
    ts = k * 128
    if ts >= hw:                            # single block: use exact extent
        return hw
    return ts


def positional_encoding(mask: jnp.ndarray, dim: int,
                        temperature: float = 10000.0,
                        normalize: bool = False,
                        spatial_tile_target: int = 2048,
                        out_dtype=jnp.float32) -> jnp.ndarray:
    """mask: (B, H, W) bool/int (True = padded). Returns (B, 2*dim, H, W).

    out_dtype=jnp.bfloat16 halves output HBM traffic (worth ~2x on v5e where
    the kernel is store-bound); default float32 matches the PyTorch module.
    For best store alignment keep dim a multiple of 8."""
    B, H, W = mask.shape
    HW = H * W
    C = 2 * dim
    TS = _choose_spatial_tile(HW, B, spatial_tile_target)
    n_s = pl.cdiv(HW, TS)

    # ---- tiny constants (O(dim)) ------------------------------------------
    f = jnp.arange(dim, dtype=jnp.float32)
    freq = temperature ** (2.0 * jnp.floor(f / 2.0) / float(dim // 2))
    inv_freq = (1.0 / freq).reshape(dim, 1).astype(jnp.float32)
    phase = ((jnp.arange(dim) % 2).astype(jnp.float32)
             * (math.pi / 2.0)).reshape(dim, 1)

    # ---- per-position prep (O(B*HW), ~1/(2*dim) of the kernel's work) ------
    not_mask = 1.0 - mask.astype(jnp.float32)                         # (B,H,W)
    y_embed = jnp.arange(1, H + 1, dtype=jnp.float32).reshape(1, H, 1) * not_mask
    x_embed = jnp.arange(1, W + 1, dtype=jnp.float32).reshape(1, 1, W) * not_mask
    if normalize:
        eps = 1e-6
        scale = 2.0 * math.pi
        y_embed = (y_embed - 0.5) / (jnp.max(y_embed, axis=1, keepdims=True) + eps) * scale
        x_embed = (x_embed - 0.5) / (jnp.max(x_embed, axis=2, keepdims=True) + eps) * scale
    y_flat = y_embed.reshape(B, 1, HW)
    x_flat = x_embed.reshape(B, 1, HW)

    in_specs = [
        pl.BlockSpec((None, 1, TS), lambda b, s: (b, 0, s)),
        pl.BlockSpec((None, 1, TS), lambda b, s: (b, 0, s)),
        pl.BlockSpec((dim, 1), lambda b, s: (0, 0)),
        pl.BlockSpec((dim, 1), lambda b, s: (0, 0)),
    ]
    out_spec = pl.BlockSpec((None, C, TS), lambda b, s: (b, 0, s))

    out_bytes = jnp.dtype(out_dtype).itemsize
    cost = pl.CostEstimate(
        flops=3 * B * C * HW,
        transcendentals=B * C * HW,
        bytes_accessed=B * C * HW * out_bytes + 2 * B * HW * 4,
    )

    kernel = functools.partial(_pe_kernel, dim=dim)

    out_flat = pl.pallas_call(
        kernel,
        out_shape=jax.ShapeDtypeStruct((B, C, HW), out_dtype),
        grid=(B, n_s),
        in_specs=in_specs,
        out_specs=out_spec,
        compiler_params=pltpu.CompilerParams(
            dimension_semantics=("parallel", "parallel"),
        ),
        cost_estimate=cost,
    )(y_flat, x_flat, inv_freq, phase)

    # Free contiguous reshape (no transpose / extra HBM pass).
    return out_flat.reshape(B, C, H, W)


def _reference(mask, dim, temperature=10000.0, normalize=False):
    """Pure-JAX faithful port of the PyTorch forward, for verification."""
    B, H, W = mask.shape
    f = jnp.arange(dim, dtype=jnp.float32)
    freq = temperature ** (2.0 * jnp.floor(f / 2.0) / float(dim // 2))
    not_mask = 1.0 - mask.astype(jnp.float32)
    y_embed = jnp.arange(1, H + 1, dtype=jnp.float32).reshape(1, H, 1) * not_mask
    x_embed = jnp.arange(1, W + 1, dtype=jnp.float32).reshape(1, 1, W) * not_mask
    if normalize:
        eps = 1e-6
        scale = 2 * math.pi
        y_embed = (y_embed - 0.5) / (y_embed.max(axis=1, keepdims=True) + eps) * scale
        x_embed = (x_embed - 0.5) / (x_embed.max(axis=2, keepdims=True) + eps) * scale
    pos_x = x_embed[:, :, :, None] / freq
    pos_y = y_embed[:, :, :, None] / freq

    def interleave(p):
        s = jnp.sin(p[..., 0::2])
        c = jnp.cos(p[..., 1::2])
        return jnp.stack((s, c), axis=4).reshape(B, H, W, dim)

    pos = jnp.concatenate((interleave(pos_y), interleave(pos_x)), axis=3)
    return jnp.transpose(pos, (0, 3, 1, 2))


if __name__ == "__main__":
    key = jax.random.PRNGKey(0)

    # Case 1: 128-divisible spatial extent, normalize=False.
    B, H, W, dim = 2, 16, 16, 32
    mask = jax.random.bernoulli(key, 0.3, (B, H, W))   # True = padded / masked
    out = jax.block_until_ready(positional_encoding(mask, dim=dim, normalize=False))
    assert out.shape == (B, 2 * dim, H, W), out.shape
    assert out.dtype == jnp.float32
    ref = _reference(mask, dim=dim, normalize=False)
    np.testing.assert_allclose(np.asarray(out), np.asarray(ref), rtol=1e-5, atol=1e-5)

    # Case 2: normalize=True branch.
    out_n = jax.block_until_ready(positional_encoding(mask, dim=dim, normalize=True))
    ref_n = _reference(mask, dim=dim, normalize=True)
    np.testing.assert_allclose(np.asarray(out_n), np.asarray(ref_n), rtol=1e-5, atol=1e-5)

    # Case 3: non-128-divisible HW -> exercises the ragged (masked) final tile.
    key2 = jax.random.PRNGKey(1)
    B2, H2, W2, dim2 = 2, 12, 20, 16
    mask2 = jax.random.bernoulli(key2, 0.3, (B2, H2, W2))
    out2 = jax.block_until_ready(positional_encoding(mask2, dim=dim2, normalize=False))
    ref2 = _reference(mask2, dim=dim2, normalize=False)
    np.testing.assert_allclose(np.asarray(out2), np.asarray(ref2), rtol=1e-5, atol=1e-5)

    print("KERNEL_OK")
</pallas_src>

<mosaic_0001>
module attributes {stable_mosaic.version = 11 : i64} {
  func.func @_pe_kernel(%arg0: i32, %arg1: i32, %arg2: memref<1x1x128xf32, #tpu.memory_space<vmem>>, %arg3: memref<1x1x128xf32, #tpu.memory_space<vmem>>, %arg4: memref<32x1xf32, #tpu.memory_space<vmem>>, %arg5: memref<32x1xf32, #tpu.memory_space<vmem>>, %arg6: memref<1x64x128xf32, #tpu.memory_space<vmem>>) attributes {dimension_semantics = [#tpu.dimension_semantics<parallel>, #tpu.dimension_semantics<parallel>], iteration_bounds = array<i64: 2, 2>, scalar_prefetch = 0 : i64, scratch_operands = 0 : i64, tpu.core_type = #tpu.core_type<tc>, window_params = [{transform_indices = @transform_0, window_bounds = array<i64: 1, 1, 128>}, {transform_indices = @transform_1, window_bounds = array<i64: 1, 1, 128>}, {pipeline_mode = #tpu.pipeline_mode<synchronous>, transform_indices = @transform_2, window_bounds = array<i64: 32, 1>}, {pipeline_mode = #tpu.pipeline_mode<synchronous>, transform_indices = @transform_3, window_bounds = array<i64: 32, 1>}, {transform_indices = @transform_4, window_bounds = array<i64: 1, 64, 128>}]} {
    %c0 = arith.constant 0 : index
    %c0_0 = arith.constant 0 : index
    %0 = vector.load %arg4[%c0, %c0_0] : memref<32x1xf32, #tpu.memory_space<vmem>>, vector<32x1xf32>
    %1 = vector.shape_cast %0 : vector<32x1xf32> to vector<32x1xf32>
    %2 = vector.broadcast %1 : vector<32x1xf32> to vector<32x128xf32>
    %c0_1 = arith.constant 0 : index
    %c0_2 = arith.constant 0 : index
    %3 = vector.load %arg5[%c0_1, %c0_2] : memref<32x1xf32, #tpu.memory_space<vmem>>, vector<32x1xf32>
    %4 = vector.shape_cast %3 : vector<32x1xf32> to vector<32x1xf32>
    %5 = vector.broadcast %4 : vector<32x1xf32> to vector<32x128xf32>
    %c0_3 = arith.constant 0 : index
    %c0_4 = arith.constant 0 : index
    %c0_5 = arith.constant 0 : index
    %6 = vector.load %arg2[%c0_3, %c0_4, %c0_5] : memref<1x1x128xf32, #tpu.memory_space<vmem>>, vector<1x1x128xf32>
    %7 = vector.shape_cast %6 : vector<1x1x128xf32> to vector<1x128xf32>
    %8 = vector.broadcast %7 : vector<1x128xf32> to vector<32x128xf32>
    %9 = arith.mulf %8, %2 : vector<32x128xf32>
    %10 = arith.addf %9, %5 : vector<32x128xf32>
    %11 = math.sin %10 : vector<32x128xf32>
    %c0_6 = arith.constant 0 : index
    %c0_7 = arith.constant 0 : index
    %c0_8 = arith.constant 0 : index
    %12 = vector.load %arg6[%c0_6, %c0_7, %c0_8] : memref<1x64x128xf32, #tpu.memory_space<vmem>>, vector<1x32x128xf32>
    %13 = vector.shape_cast %12 : vector<1x32x128xf32> to vector<32x128xf32>
    %14 = vector.shape_cast %11 : vector<32x128xf32> to vector<1x32x128xf32>
    tpu.vector_store %arg6[%c0_6, %c0_7, %c0_8], %14 {strides = array<i32>} : memref<1x64x128xf32, #tpu.memory_space<vmem>>, vector<1x32x128xf32>,
    %c0_9 = arith.constant 0 : index
    %c0_10 = arith.constant 0 : index
    %c0_11 = arith.constant 0 : index
    %15 = vector.load %arg3[%c0_9, %c0_10, %c0_11] : memref<1x1x128xf32, #tpu.memory_space<vmem>>, vector<1x1x128xf32>
    %16 = vector.shape_cast %15 : vector<1x1x128xf32> to vector<1x128xf32>
    %17 = vector.broadcast %16 : vector<1x128xf32> to vector<32x128xf32>
    %18 = arith.mulf %17, %2 : vector<32x128xf32>
    %19 = arith.addf %18, %5 : vector<32x128xf32>
    %20 = math.sin %19 : vector<32x128xf32>
    %c0_12 = arith.constant 0 : index
    %c32 = arith.constant 32 : index
    %c0_13 = arith.constant 0 : index
    %21 = vector.load %arg6[%c0_12, %c32, %c0_13] : memref<1x64x128xf32, #tpu.memory_space<vmem>>, vector<1x32x128xf32>
    %22 = vector.shape_cast %21 : vector<1x32x128xf32> to vector<32x128xf32>
    %23 = vector.shape_cast %20 : vector<32x128xf32> to vector<1x32x128xf32>
    tpu.vector_store %arg6[%c0_12, %c32, %c0_13], %23 {strides = array<i32>} : memref<1x64x128xf32, #tpu.memory_space<vmem>>, vector<1x32x128xf32>,
    return
  }
  func.func @transform_0(%arg0: i32, %arg1: i32) -> (i32, i32, i32) {
    %c0_i32 = arith.constant 0 : i32
    %c0_i32_0 = arith.constant 0 : i32
    return %arg0, %c0_i32, %arg1 : i32, i32, i32
  }
  func.func @transform_1(%arg0: i32, %arg1: i32) -> (i32, i32, i32) {
    %c0_i32 = arith.constant 0 : i32
    %c0_i32_0 = arith.constant 0 : i32
    return %arg0, %c0_i32, %arg1 : i32, i32, i32
  }
  func.func @transform_2(%arg0: i32, %arg1: i32) -> (i32, i32) {
    %c0_i32 = arith.constant 0 : i32
    %c0_i32_0 = arith.constant 0 : i32
    %c0_i32_1 = arith.constant 0 : i32
    return %c0_i32, %c0_i32_0 : i32, i32
  }
  func.func @transform_3(%arg0: i32, %arg1: i32) -> (i32, i32) {
    %c0_i32 = arith.constant 0 : i32
    %c0_i32_0 = arith.constant 0 : i32
    %c0_i32_1 = arith.constant 0 : i32
    return %c0_i32, %c0_i32_0 : i32, i32
  }
  func.func @transform_4(%arg0: i32, %arg1: i32) -> (i32, i32, i32) {
    %c0_i32 = arith.constant 0 : i32
    %c0_i32_0 = arith.constant 0 : i32
    return %arg0, %c0_i32, %arg1 : i32, i32, i32
  }
}

</mosaic_0001>

<llo_original>
// kernel: tpu_custom_call.1
$region0: #{tpu_custom_call.1}
  #allocation0 [shape = 'u32[]', space=smem, size = 0x4, offset = 0x4, fixed_abs, tag = 'smem constant byte address 0x4 - core index']
  #allocation1 [shape = 'u32[72,128]{1,0:T(1,128)}', space=vmem, size = 0x9000, scoped, tag = 'internal scratch']
  %s0 = inlined_call_operand.vmem [shape: f32[2,1,256], index: 0, kind: input, shape index: {}]
  %s1 = inlined_call_operand.vmem [shape: f32[2,1,256], index: 1, kind: input, shape index: {}]
  %s2 = inlined_call_operand.vmem [shape: f32[32,1], index: 2, kind: input, shape index: {}]
  %s3 = inlined_call_operand.vmem [shape: f32[32,1], index: 3, kind: input, shape index: {}]
  %s4 = inlined_call_operand.hbm [shape: f32[2,64,256], index: 4, kind: output, shape index: {}]
  %s5 = sld [smem:[#allocation0]]
  $region49: #{tpu_custom_call.1} parent=0
    _
  %s7 = ssub.s32 1, %s5
  %s8 = scalar_select 0, %s7, %s5
  $region1: #{tpu_custom_call.1} parent=0
    #allocation2 [shape = 'u8[65536]{0}', space=vmem, size = 0x10000, scoped, tag = 'output window, operand 0']
    #allocation3 [shape = 's32[2]{0}', space=sflag, size = 0x8, scoped, tag = 'scoped memory for tpu_custom_call.1']
    %9 = vsyncpa [#allocation3], 0
    %s10 = scalar_lea.sflag [#allocation3], 1
    %11 = vsyncpa %s10, 0
    loop: start=0, step=1, limit=6
    $region2: #{tpu_custom_call.1} parent=1 // loop_pre_header
      _
    $region3: #{tpu_custom_call.1} parent=1 // loop_header
      %s13 = sphi 0, %s17
      %p14 = scmp.ge.s32.totalorder %s13, 6
      %s20 = sphi 0, %s32
      %s21 = sphi 0, %s28
      %s22 = sphi 0, %s20
      %s23 = sphi 0, %s21
      %s24 = sphi 0, %s22
      %s25 = sphi 0, %s23
      %s37 = sphi 0, %s39
      %s40 = sphi 0, %s37
      %s41 = sphi 0, %s40
      %s57 = sphi 0, %s41
      %s65 = sphi 0, %s67
      %s68 = sphi 0, %s65
      %s69 = sphi 0, %s68
      %s85 = sphi 0, %s69
      %s89 = sphi 0, %s89
      %s91 = sphi 0, %s89
      %s92 = sphi 0, %s91
      %s106 = sphi 0, %s92
      %s110 = sphi 0, %s110
      %s112 = sphi 0, %s110
      %s113 = sphi 0, %s112
      %s127 = sphi 0, %s113
      %s135 = sphi 0, %s137
      %s138 = sphi 0, %s135
      %s139 = sphi 0, %s138
      %s155 = sphi 0, %s139
    $region4: #{tpu_custom_call.1} parent=1 // loop_header_branch
      %16 = sbr.rel (%p14) target = $region8
    $region5: #{tpu_custom_call.1} parent=1 // loop_body
      %s18 = ssub.s32 %s13, 1
      %s19 = ssub.s32 %s13, 2
      %s26 = sadd.s32 1, %s21
      %p27 = scmp.ge.s32.totalorder %s26, 2
      %s28 = scalar_select %p27, 0, %s26
      %s29 = sadd.s32 1, %s20
      %s30 = scalar_select %p27, %s29, %s20
      %p31 = scmp.ge.s32.totalorder %s30, 2
      %s32 = scalar_select %p31, 0, %s30
      %s33 = ssub.s32 %s20, %s32
      %s34 = ssub.s32 %s21, %s28
      %s35 = sor.u32 %s33, %s34
      %p36 = scmp.eq.s32.totalorder %s35, 0
      %s38 = sadd.s32 %s37, 1
      %s39 = scalar_select %p36, %s37, %s38
      %p42 = pneg %p36
      %p43 = scmp.eq.s32.totalorder %s13, 3
      %p44 = por %p42, %p43
      %p45 = scmp.ne.s32.totalorder %s37, %s40
      %p46 = scmp.eq.s32.totalorder %s13, 0
      %p47 = por %p45, %p46
      %p48 = scmp.ne.s32.totalorder %s37, %s40
      %p49 = scmp.eq.s32.totalorder %s18, 3
      %p50 = por %p48, %p49
      %p51 = scmp.ne.s32.totalorder %s40, %s41
      %p52 = scmp.eq.s32.totalorder %s18, 0
      %p53 = por %p51, %p52
      %p54 = scmp.ne.s32.totalorder %s40, %s41
      %p55 = scmp.eq.s32.totalorder %s19, 3
      %p56 = por %p54, %p55
      %p58 = scmp.ne.s32.totalorder %s41, %s57
      %p59 = scmp.eq.s32.totalorder %s19, 0
      %p60 = por %p58, %p59
      %s61 = ssub.s32 %s20, %s32
      %s62 = ssub.s32 %s21, %s28
      %s63 = sor.u32 %s61, %s62
      %p64 = scmp.eq.s32.totalorder %s63, 0
      %s66 = sadd.s32 %s65, 1
      %s67 = scalar_select %p64, %s65, %s66
      %p70 = pneg %p64
      %p71 = scmp.eq.s32.totalorder %s13, 3
      %p72 = por %p70, %p71
      %p73 = scmp.ne.s32.totalorder %s65, %s68
      %p74 = scmp.eq.s32.totalorder %s13, 0
      %p75 = por %p73, %p74
      %p76 = scmp.ne.s32.totalorder %s65, %s68
      %p77 = scmp.eq.s32.totalorder %s18, 3
      %p78 = por %p76, %p77
      %p79 = scmp.ne.s32.totalorder %s68, %s69
      %p80 = scmp.eq.s32.totalorder %s18, 0
      %p81 = por %p79, %p80
      %p82 = scmp.ne.s32.totalorder %s68, %s69
      %p83 = scmp.eq.s32.totalorder %s19, 3
      %p84 = por %p82, %p83
      %p86 = scmp.ne.s32.totalorder %s69, %s85
      %p87 = scmp.eq.s32.totalorder %s19, 0
      %p88 = por %p86, %p87
      %s90 = sadd.s32 %s89, 1
      %p93 = scmp.eq.s32.totalorder %s13, 3
      %p94 = scmp.ne.s32.totalorder %s89, %s91
      %p95 = scmp.eq.s32.totalorder %s13, 0
      %p96 = por %p94, %p95
      %p97 = scmp.ne.s32.totalorder %s89, %s91
      %p98 = scmp.eq.s32.totalorder %s18, 3
      %p99 = por %p97, %p98
      %p100 = scmp.ne.s32.totalorder %s91, %s92
      %p101 = scmp.eq.s32.totalorder %s18, 0
      %p102 = por %p100, %p101
      %p103 = scmp.ne.s32.totalorder %s91, %s92
      %p104 = scmp.eq.s32.totalorder %s19, 3
      %p105 = por %p103, %p104
      %p107 = scmp.ne.s32.totalorder %s92, %s106
      %p108 = scmp.eq.s32.totalorder %s19, 0
      %p109 = por %p107, %p108
      %s111 = sadd.s32 %s110, 1
      %p114 = scmp.eq.s32.totalorder %s13, 3
      %p115 = scmp.ne.s32.totalorder %s110, %s112
      %p116 = scmp.eq.s32.totalorder %s13, 0
      %p117 = por %p115, %p116
      %p118 = scmp.ne.s32.totalorder %s110, %s112
      %p119 = scmp.eq.s32.totalorder %s18, 3
      %p120 = por %p118, %p119
      %p121 = scmp.ne.s32.totalorder %s112, %s113
      %p122 = scmp.eq.s32.totalorder %s18, 0
      %p123 = por %p121, %p122
      %p124 = scmp.ne.s32.totalorder %s112, %s113
      %p125 = scmp.eq.s32.totalorder %s19, 3
      %p126 = por %p124, %p125
      %p128 = scmp.ne.s32.totalorder %s113, %s127
      %p129 = scmp.eq.s32.totalorder %s19, 0
      %p130 = por %p128, %p129
      %s131 = ssub.s32 %s20, %s32
      %s132 = ssub.s32 %s21, %s28
      %s133 = sor.u32 %s131, %s132
      %p134 = scmp.eq.s32.totalorder %s133, 0
      %s136 = sadd.s32 %s135, 1
      %s137 = scalar_select %p134, %s135, %s136
      %p140 = pneg %p134
      %p141 = scmp.eq.s32.totalorder %s13, 3
      %p142 = por %p140, %p141
      %p143 = scmp.ne.s32.totalorder %s135, %s138
      %p144 = scmp.eq.s32.totalorder %s13, 0
      %p145 = por %p143, %p144
      %p146 = scmp.ne.s32.totalorder %s135, %s138
      %p147 = scmp.eq.s32.totalorder %s18, 3
      %p148 = por %p146, %p147
      %p149 = scmp.ne.s32.totalorder %s138, %s139
      %p150 = scmp.eq.s32.totalorder %s18, 0
      %p151 = por %p149, %p150
      %p152 = scmp.ne.s32.totalorder %s138, %s139
      %p153 = scmp.eq.s32.totalorder %s19, 3
      %p154 = por %p152, %p153
      %p156 = scmp.ne.s32.totalorder %s139, %s155
      %p157 = scmp.eq.s32.totalorder %s19, 0
      %p158 = por %p156, %p157
      %p159 = scmp.le.s32.totalorder 1, %s13
      %p160 = scmp.lt.s32.totalorder %s13, 5
      %p161 = pnand %p159, %p160
      %p162 = pneg %p161
      // Predicated region
      $region9: #{tpu_custom_call.1} parent=5 // pred_check
        _
      $region10: #{tpu_custom_call.1} parent=5 // pred_check_branch
        %164 = sbr.rel (%p161) target = $region12
      $region11: #{tpu_custom_call.1} parent=5 // pred_region
        %s165 = ssub.s32 %s13, 1
        // Predicated region
        $region13: #{tpu_custom_call.1} parent=11 // pred_check
          %p166 = pneg %p102
        $region14: #{tpu_custom_call.1} parent=11 // pred_check_branch
          %168 = sbr.rel (%p166) target = $region16
        $region15: #{tpu_custom_call.1} parent=11 // pred_region
          _
        $region16: #{tpu_custom_call.1} parent=11 // pred_fallthru
          _
        // Predicated region
        $region17: #{tpu_custom_call.1} parent=11 // pred_check
          %p169 = pneg %p123
        $region18: #{tpu_custom_call.1} parent=11 // pred_check_branch
          %171 = sbr.rel (%p169) target = $region20
        $region19: #{tpu_custom_call.1} parent=11 // pred_region
          _
        $region20: #{tpu_custom_call.1} parent=11 // pred_fallthru
          _
      $region12: #{tpu_custom_call.1} parent=5 // pred_fallthru
        _
      %p172 = scmp.lt.s32.totalorder %s13, 4
      // Predicated region
      $region21: #{tpu_custom_call.1} parent=5 // pred_check
        %p173 = pneg %p172
      $region22: #{tpu_custom_call.1} parent=5 // pred_check_branch
        %175 = sbr.rel (%p173) target = $region24
      $region23: #{tpu_custom_call.1} parent=5 // pred_region
        // Predicated region
        $region25: #{tpu_custom_call.1} parent=23 // pred_check
          %p176 = pneg %p47
        $region26: #{tpu_custom_call.1} parent=23 // pred_check_branch
          %178 = sbr.rel (%p176) target = $region28
        $region27: #{tpu_custom_call.1} parent=23 // pred_region
          %p179 = scmp.lt.s32.totalorder %s20, 1
          %s180 = scalar_select %p179, %s20, 1
          %p181 = scmp.lt.s32.totalorder %s21, 1
          %s182 = scalar_select %p181, %s21, 1
          %s183 = smul.addr %s180, 2
          %s184 = sadd.s32 %s182, %s183
          %s185 = scalar_lea.vmem %s0, %s184
        $region28: #{tpu_custom_call.1} parent=23 // pred_fallthru
          _
        // Predicated region
        $region29: #{tpu_custom_call.1} parent=23 // pred_check
          %p186 = pneg %p75
        $region30: #{tpu_custom_call.1} parent=23 // pred_check_branch
          %188 = sbr.rel (%p186) target = $region32
        $region31: #{tpu_custom_call.1} parent=23 // pred_region
          %p189 = scmp.lt.s32.totalorder %s20, 1
          %s190 = scalar_select %p189, %s20, 1
          %p191 = scmp.lt.s32.totalorder %s21, 1
          %s192 = scalar_select %p191, %s21, 1
          %s193 = smul.addr %s190, 2
          %s194 = sadd.s32 %s192, %s193
          %s195 = scalar_lea.vmem %s1, %s194
        $region32: #{tpu_custom_call.1} parent=23 // pred_fallthru
          _
      $region24: #{tpu_custom_call.1} parent=5 // pred_fallthru
        _
      %p196 = scmp.le.s32.totalorder 1, %s13
      %p197 = scmp.lt.s32.totalorder %s13, 5
      %p198 = pnand %p196, %p197
      %p199 = pneg %p198
      // Predicated region
      $region33: #{tpu_custom_call.1} parent=5 // pred_check
        _
      $region34: #{tpu_custom_call.1} parent=5 // pred_check_branch
        %201 = sbr.rel (%p198) target = $region36
      $region35: #{tpu_custom_call.1} parent=5 // pred_region
        %s202 = ssub.s32 %s13, 1
        %p203 = scmp.lt.s32.totalorder %s22, 1
        %s204 = scalar_select %p203, %s22, 1
        %p205 = scmp.lt.s32.totalorder %s23, 1
        %s206 = scalar_select %p205, %s23, 1
        %s207 = smul.addr %s204, 2
        %s208 = sadd.s32 %s206, %s207
        %s209 = scalar_lea.vmem %s0, %s208
        %p210 = pneg %p53
        %p211 = pneg %p50
        %p212 = scmp.lt.s32.totalorder %s22, 1
        %s213 = scalar_select %p212, %s22, 1
        %p214 = scmp.lt.s32.totalorder %s23, 1
        %s215 = scalar_select %p214, %s23, 1
        %s216 = smul.addr %s213, 2
        %s217 = sadd.s32 %s215, %s216
        %s218 = scalar_lea.vmem %s1, %s217
        %p219 = pneg %p81
        %p220 = pneg %p78
        %p221 = pneg %p102
        %p222 = pneg %p99
        %p223 = pneg %p123
        %p224 = pneg %p120
        %p225 = pneg %p151
        %p226 = pneg %p148
        %s227 = sand.u32 %s138, 1
        %s228 = scalar_lea.sflag [#allocation3], %s227
        %s229 = sand.u32 %s138, 1
        %s230 = smul.addr %s229, 64
        %s231 = scalar_lea.vmem [#allocation2], %s230
        %p232 = scmp.lt.s32.totalorder %s22, 1
        %s233 = scalar_select %p232, %s22, 1
        %p234 = scmp.lt.s32.totalorder %s23, 1
        %s235 = scalar_select %p234, %s23, 1
        %s236 = smul.addr %s233, 2
        %s237 = sadd.s32 %s235, %s236
        %s238 = scalar_lea.vmem %s0, %s237
        %p239 = scmp.lt.s32.totalorder %s22, 1
        %s240 = scalar_select %p239, %s22, 1
        %p241 = scmp.lt.s32.totalorder %s23, 1
        %s242 = scalar_select %p241, %s23, 1
        %s243 = smul.addr %s240, 2
        %s244 = sadd.s32 %s242, %s243
        %s245 = scalar_lea.vmem %s1, %s244
        %v246 = vld [vmem:[%s2] sm:$0xff]
        %v247 = vld [vmem:[%s2 + $0x8] sm:$0xff]
        %v248 = vld [vmem:[%s2 + $0x10] sm:$0xff]
        %v249 = vld [vmem:[%s2 + $0x18] sm:$0xff]
        %251 = vset.pattern.permute.xlu0 0
        %252 = vperm.xlu0 %251, %v246
        %v253 = vpop.permute.xlu0 %252
        %256 = vset.pattern.permute.xlu0 0
        %257 = vperm.xlu0 %256, %v247
        %v258 = vpop.permute.xlu0 %257
        %261 = vset.pattern.permute.xlu0 0
        %262 = vperm.xlu0 %261, %v248
        %v263 = vpop.permute.xlu0 %262
        %266 = vset.pattern.permute.xlu0 0
        %267 = vperm.xlu0 %266, %v249
        %v268 = vpop.permute.xlu0 %267
        %v270 = vld [vmem:[%s3] sm:$0xff]
        %v271 = vld [vmem:[%s3 + $0x8] sm:$0xff]
        %v272 = vld [vmem:[%s3 + $0x10] sm:$0xff]
        %v273 = vld [vmem:[%s3 + $0x18] sm:$0xff]
        %275 = vset.pattern.permute.xlu0 0
        %276 = vperm.xlu0 %275, %v270
        %v277 = vpop.permute.xlu0 %276
        %280 = vset.pattern.permute.xlu0 0
        %281 = vperm.xlu0 %280, %v271
        %v282 = vpop.permute.xlu0 %281
        %285 = vset.pattern.permute.xlu0 0
        %286 = vperm.xlu0 %285, %v272
        %v287 = vpop.permute.xlu0 %286
        %290 = vset.pattern.permute.xlu0 0
        %291 = vperm.xlu0 %290, %v273
        %v292 = vpop.permute.xlu0 %291
        %v294 = vld [vmem:[%s238] sm:$0x1]
        %v296 = vperm.slane %v294, 0
        %v298 = vmul.f32 %v296, %v253
        %v299 = vmul.f32 %v296, %v258
        %v300 = vmul.f32 %v296, %v263
        %v301 = vmul.f32 %v296, %v268
        %v302 = vadd.f32 %v298, %v277
        %v303 = vadd.f32 %v299, %v282
        %v304 = vadd.f32 %v300, %v287
        %v305 = vadd.f32 %v301, %v292
        %v306 = vand.u32 2147483647, %v302
        %vm307 = vcmp.le.f32.partialorder %v306, 0.7853982
        %vm308 = vcmp.lt.s32.totalorder %v302, 0
        %v309 = vand.u32 %v302, 2139095040
        %v310 = vshrl.u32 %v309, 23
        %v311 = vsub.s32 %v310, 127
        %v312 = vand.u32 2147483647, %v302
        %v313 = vand.u32 %v312, 8388607
        %v314 = vor.u32 %v313, 8388608
        %v315 = vsub.s32 0, %v314
        %v316 = vadd.s32 %v311, 1
        %vm317 = vcmp.gt.s32.totalorder %v316, 0
        %v318 = vsel %vm317, %v316, 0
        %v319 = vshrl.u32 %v318, 5
        %v320 = vand.u32 %v318, 31
        %v321 = vsub.s32 32, %v320
        %v322 = vshrl.u32 683565275, %v321
        %v323 = vshll.u32 683565275, %v320
        %v324 = vshrl.u32 2475754826, %v321
        %v325 = vor.u32 %v323, %v324
        %v326 = vshll.u32 2475754826, %v320
        %v327 = vshrl.u32 2131351028, %v321
        %v328 = vor.u32 %v326, %v327
        %v329 = vshll.u32 2131351028, %v320
        %v330 = vshrl.u32 2102212464, %v321
        %v331 = vor.u32 %v329, %v330
        %v332 = vshll.u32 2102212464, %v320
        %v333 = vshrl.u32 920167782, %v321
        %v334 = vor.u32 %v332, %v333
        %v335 = vshll.u32 920167782, %v320
        %v336 = vshrl.u32 1326507024, %v321
        %v337 = vor.u32 %v335, %v336
        %vm338 = vcmp.lt.s32.totalorder %v319, 1
        %vm339 = vcmp.lt.s32.totalorder %v319, 2
        %vm340 = vcmp.lt.s32.totalorder %v319, 3
        %vm341 = vcmp.lt.s32.totalorder %v319, 4
        %v342 = vsel %vm338, %v322, %v325
        %v343 = vsel %vm341, %v331, 2102212464
        %v344 = vsel %vm340, %v328, %v343
        %v345 = vsel %vm339, %v342, %v344
        %v346 = vsel %vm338, %v325, %v328
        %v347 = vsel %vm341, %v334, 920167782
        %v348 = vsel %vm340, %v331, %v347
        %v349 = vsel %vm339, %v346, %v348
        %v350 = vsel %vm338, %v328, %v331
        %v351 = vsel %vm341, %v337, 1326507024
        %v352 = vsel %vm340, %v334, %v351
        %v353 = vsel %vm339, %v350, %v352
        %v354 = vshll.u32 %v314, 8
        %v355 = vand.u32 %v354, 65535
        %v356 = vshrl.u32 %v354, 16
        %v357 = vand.u32 %v353, 65535
        %v358 = vshrl.u32 %v353, 16
        %v359 = vmul.u32 %v355, %v357
        %v360 = vmul.u32 %v355, %v358
        %v361 = vmul.u32 %v356, %v357
        %v362 = vmul.u32 %v356, %v358
        %v363 = vshll.u32 %v360, 16
        %v364 = vshrl.u32 %v360, 16
        %v365 = vshll.u32 %v361, 16
        %v366 = vshrl.u32 %v361, 16
        %vm367 = vc.u32 %v359, %v363
        %v368 = vsel %vm367, 1, 0
        %v369 = vadd.s32 %v359, %v363
        %v370 = vadd.s32 %v362, %v368
        %vm371 = vc.u32 %v369, %v365
        %v372 = vsel %vm371, 1, 0
        %v373 = vadd.s32 %v369, %v365
        %v374 = vadd.s32 %v370, %v372
        %v375 = vadd.s32 %v374, %v364
        %v376 = vadd.s32 %v375, %v366
        %v377 = vand.u32 %v354, 65535
        %v378 = vshrl.u32 %v354, 16
        %v379 = vand.u32 %v349, 65535
        %v380 = vshrl.u32 %v349, 16
        %v381 = vmul.u32 %v377, %v379
        %v382 = vmul.u32 %v377, %v380
        %v383 = vmul.u32 %v378, %v379
        %v384 = vmul.u32 %v378, %v380
        %v385 = vshll.u32 %v382, 16
        %v386 = vshrl.u32 %v382, 16
        %v387 = vshll.u32 %v383, 16
        %v388 = vshrl.u32 %v383, 16
        %vm389 = vc.u32 %v381, %v385
        %v390 = vsel %vm389, 1, 0
        %v391 = vadd.s32 %v381, %v385
        %v392 = vadd.s32 %v384, %v390
        %vm393 = vc.u32 %v391, %v387
        %v394 = vsel %vm393, 1, 0
        %v395 = vadd.s32 %v391, %v387
        %v396 = vadd.s32 %v392, %v394
        %v397 = vadd.s32 %v396, %v386
        %v398 = vadd.s32 %v397, %v388
        %v399 = vmul.u32 %v354, %v345
        %v400 = vadd.s32 %v376, %v395
        %vm401 = vc.u32 %v376, %v395
        %v402 = vadd.s32 %v398, 1
        %v403 = vsel %vm401, %v402, %v398
        %v404 = vadd.s32 %v399, %v403
        %v405 = vadd.s32 %v404, 536870912
        %v406 = vshrl.u32 %v405, 30
        %v407 = vshll.u32 %v406, 30
        %v408 = vsub.s32 %v404, %v407
        %vm409 = vcmp.lt.s32.totalorder %v408, 0
        %v410 = vsub.s32 0, %v408
        %v411 = vsel %vm409, %v410, %v408
        %v412 = vclz %v411
        %v413 = vsub.s32 %v412, 2
        %vm414 = vcmp.gt.s32.totalorder 0, %v413
        %v415 = vsel %vm414, 0, %v413
        %v416 = vsub.s32 32, %v415
        %v417 = vshll.u32 %v408, %v415
        %v418 = vshrl.u32 %v400, %v416
        %v419 = vor.u32 %v417, %v418
        %v420 = vsub.s32 4294967266, %v415
        %v421 = vadd.s32 %v420, 127
        %v422 = vshll.u32 %v421, 23
        %v423 = vor.u32 4788187, %v422
        %v424 = vand.u32 2147483647, %v423
        %v426 = vcvt.s32.f32 %v419
        %v427 = vmul.f32 %v426, %v424
        %v428 = vxor.u32 %v427, 2147483648
        %v429 = vsel %vm308, %v428, %v427
        %v430 = vsub.s32 4, %v406
        %v431 = vsel %vm308, %v430, %v406
        %v432 = vsel %vm307, %v302, %v429
        %v433 = vsel %vm307, 0, %v431
        %v434 = vmul.f32 %v432, %v432
        %v435 = vmul.f32 %v434, -0.001358992
        %v436 = vadd.f32 %v435, 0.041655596
        %v437 = vmul.f32 %v434, %v436
        %v438 = vadd.f32 %v437, -0.4999988
        %v439 = vmul.f32 %v434, %v438
        %v440 = vadd.f32 1.0, %v439
        %v441 = vmul.f32 %v432, %v432
        %v442 = vmul.f32 %v441, -0.00019511016
        %v443 = vadd.f32 %v442, 0.008332121
        %v444 = vmul.f32 %v441, %v443
        %v445 = vadd.f32 %v444, -0.16666654
        %v446 = vmul.f32 %v441, %v445
        %v447 = vadd.f32 %v446, 1.0
        %v448 = vmul.f32 %v447, %v432
        %vm449 = vweird.f32 %v302
        %v450 = vadd.s32 %v433, 3
        %v451 = vand.u32 %v450, 3
        %vm452 = vcmp.lt.s32.totalorder %v451, 2
        %vm453 = vcmp.eq.s32.totalorder %v451, 0
        %v454 = vxor.u32 %v448, 2147483648
        %v455 = vsel %vm453, %v440, %v454
        %vm456 = vcmp.eq.s32.totalorder %v451, 2
        %v457 = vxor.u32 %v440, 2147483648
        %v458 = vsel %vm456, %v457, %v448
        %v459 = vsel %vm452, %v455, %v458
        %v460 = vsel %vm449, nan, %v459
        %v461 = vand.u32 2147483647, %v303
        %vm462 = vcmp.le.f32.partialorder %v461, 0.7853982
        %vm463 = vcmp.lt.s32.totalorder %v303, 0
        %v464 = vand.u32 %v303, 2139095040
        %v465 = vshrl.u32 %v464, 23
        %v466 = vsub.s32 %v465, 127
        %v467 = vand.u32 2147483647, %v303
        %v468 = vand.u32 %v467, 8388607
        %v469 = vor.u32 %v468, 8388608
        %v470 = vsub.s32 0, %v469
        %v471 = vadd.s32 %v466, 1
        %vm472 = vcmp.gt.s32.totalorder %v471, 0
        %v473 = vsel %vm472, %v471, 0
        %v474 = vshrl.u32 %v473, 5
        %v475 = vand.u32 %v473, 31
        %v476 = vsub.s32 32, %v475
        %v477 = vshrl.u32 683565275, %v476
        %v478 = vshll.u32 683565275, %v475
        %v479 = vshrl.u32 2475754826, %v476
        %v480 = vor.u32 %v478, %v479
        %v481 = vshll.u32 2475754826, %v475
        %v482 = vshrl.u32 2131351028, %v476
        %v483 = vor.u32 %v481, %v482
        %v484 = vshll.u32 2131351028, %v475
        %v485 = vshrl.u32 2102212464, %v476
        %v486 = vor.u32 %v484, %v485
        %v487 = vshll.u32 2102212464, %v475
        %v488 = vshrl.u32 920167782, %v476
        %v489 = vor.u32 %v487, %v488
        %v490 = vshll.u32 920167782, %v475
        %v491 = vshrl.u32 1326507024, %v476
        %v492 = vor.u32 %v490, %v491
        %vm493 = vcmp.lt.s32.totalorder %v474, 1
        %vm494 = vcmp.lt.s32.totalorder %v474, 2
        %vm495 = vcmp.lt.s32.totalorder %v474, 3
        %vm496 = vcmp.lt.s32.totalorder %v474, 4
        %v497 = vsel %vm493, %v477, %v480
        %v498 = vsel %vm496, %v486, 2102212464
        %v499 = vsel %vm495, %v483, %v498
        %v500 = vsel %vm494, %v497, %v499
        %v501 = vsel %vm493, %v480, %v483
        %v502 = vsel %vm496, %v489, 920167782
        %v503 = vsel %vm495, %v486, %v502
        %v504 = vsel %vm494, %v501, %v503
        %v505 = vsel %vm493, %v483, %v486
        %v506 = vsel %vm496, %v492, 1326507024
        %v507 = vsel %vm495, %v489, %v506
        %v508 = vsel %vm494, %v505, %v507
        %v509 = vshll.u32 %v469, 8
        %v510 = vand.u32 %v509, 65535
        %v511 = vshrl.u32 %v509, 16
        %v512 = vand.u32 %v508, 65535
        %v513 = vshrl.u32 %v508, 16
        %v514 = vmul.u32 %v510, %v512
        %v515 = vmul.u32 %v510, %v513
        %v516 = vmul.u32 %v511, %v512
        %v517 = vmul.u32 %v511, %v513
        %v518 = vshll.u32 %v515, 16
        %v519 = vshrl.u32 %v515, 16
        %v520 = vshll.u32 %v516, 16
        %v521 = vshrl.u32 %v516, 16
        %vm522 = vc.u32 %v514, %v518
        %v523 = vsel %vm522, 1, 0
        %v524 = vadd.s32 %v514, %v518
        %v525 = vadd.s32 %v517, %v523
        %vm526 = vc.u32 %v524, %v520
        %v527 = vsel %vm526, 1, 0
        %v528 = vadd.s32 %v524, %v520
        %v529 = vadd.s32 %v525, %v527
        %v530 = vadd.s32 %v529, %v519
        %v531 = vadd.s32 %v530, %v521
        %v532 = vand.u32 %v509, 65535
        %v533 = vshrl.u32 %v509, 16
        %v534 = vand.u32 %v504, 65535
        %v535 = vshrl.u32 %v504, 16
        %v536 = vmul.u32 %v532, %v534
        %v537 = vmul.u32 %v532, %v535
        %v538 = vmul.u32 %v533, %v534
        %v539 = vmul.u32 %v533, %v535
        %v540 = vshll.u32 %v537, 16
        %v541 = vshrl.u32 %v537, 16
        %v542 = vshll.u32 %v538, 16
        %v543 = vshrl.u32 %v538, 16
        %vm544 = vc.u32 %v536, %v540
        %v545 = vsel %vm544, 1, 0
        %v546 = vadd.s32 %v536, %v540
        %v547 = vadd.s32 %v539, %v545
        %vm548 = vc.u32 %v546, %v542
        %v549 = vsel %vm548, 1, 0
        %v550 = vadd.s32 %v546, %v542
        %v551 = vadd.s32 %v547, %v549
        %v552 = vadd.s32 %v551, %v541
        %v553 = vadd.s32 %v552, %v543
        %v554 = vmul.u32 %v509, %v500
        %v555 = vadd.s32 %v531, %v550
        %vm556 = vc.u32 %v531, %v550
        %v557 = vadd.s32 %v553, 1
        %v558 = vsel %vm556, %v557, %v553
        %v559 = vadd.s32 %v554, %v558
        %v560 = vadd.s32 %v559, 536870912
        %v561 = vshrl.u32 %v560, 30
        %v562 = vshll.u32 %v561, 30
        %v563 = vsub.s32 %v559, %v562
        %vm564 = vcmp.lt.s32.totalorder %v563, 0
        %v565 = vsub.s32 0, %v563
        %v566 = vsel %vm564, %v565, %v563
        %v567 = vclz %v566
        %v568 = vsub.s32 %v567, 2
        %vm569 = vcmp.gt.s32.totalorder 0, %v568
        %v570 = vsel %vm569, 0, %v568
        %v571 = vsub.s32 32, %v570
        %v572 = vshll.u32 %v563, %v570
        %v573 = vshrl.u32 %v555, %v571
        %v574 = vor.u32 %v572, %v573
        %v575 = vsub.s32 4294967266, %v570
        %v576 = vadd.s32 %v575, 127
        %v577 = vshll.u32 %v576, 23
        %v578 = vor.u32 4788187, %v577
        %v579 = vand.u32 2147483647, %v578
        %v581 = vcvt.s32.f32 %v574
        %v582 = vmul.f32 %v581, %v579
        %v583 = vxor.u32 %v582, 2147483648
        %v584 = vsel %vm463, %v583, %v582
        %v585 = vsub.s32 4, %v561
        %v586 = vsel %vm463, %v585, %v561
        %v587 = vsel %vm462, %v303, %v584
        %v588 = vsel %vm462, 0, %v586
        %v589 = vmul.f32 %v587, %v587
        %v590 = vmul.f32 %v589, -0.001358992
        %v591 = vadd.f32 %v590, 0.041655596
        %v592 = vmul.f32 %v589, %v591
        %v593 = vadd.f32 %v592, -0.4999988
        %v594 = vmul.f32 %v589, %v593
        %v595 = vadd.f32 1.0, %v594
        %v596 = vmul.f32 %v587, %v587
        %v597 = vmul.f32 %v596, -0.00019511016
        %v598 = vadd.f32 %v597, 0.008332121
        %v599 = vmul.f32 %v596, %v598
        %v600 = vadd.f32 %v599, -0.16666654
        %v601 = vmul.f32 %v596, %v600
        %v602 = vadd.f32 %v601, 1.0
        %v603 = vmul.f32 %v602, %v587
        %vm604 = vweird.f32 %v303
        %v605 = vadd.s32 %v588, 3
        %v606 = vand.u32 %v605, 3
        %vm607 = vcmp.lt.s32.totalorder %v606, 2
        %vm608 = vcmp.eq.s32.totalorder %v606, 0
        %v609 = vxor.u32 %v603, 2147483648
        %v610 = vsel %vm608, %v595, %v609
        %vm611 = vcmp.eq.s32.totalorder %v606, 2
        %v612 = vxor.u32 %v595, 2147483648
        %v613 = vsel %vm611, %v612, %v603
        %v614 = vsel %vm607, %v610, %v613
        %v615 = vsel %vm604, nan, %v614
        %v616 = vand.u32 2147483647, %v304
        %vm617 = vcmp.le.f32.partialorder %v616, 0.7853982
        %vm618 = vcmp.lt.s32.totalorder %v304, 0
        %v619 = vand.u32 %v304, 2139095040
        %v620 = vshrl.u32 %v619, 23
        %v621 = vsub.s32 %v620, 127
        %v622 = vand.u32 2147483647, %v304
        %v623 = vand.u32 %v622, 8388607
        %v624 = vor.u32 %v623, 8388608
        %v625 = vsub.s32 0, %v624
        %v626 = vadd.s32 %v621, 1
        %vm627 = vcmp.gt.s32.totalorder %v626, 0
        %v628 = vsel %vm627, %v626, 0
        %v629 = vshrl.u32 %v628, 5
        %v630 = vand.u32 %v628, 31
        %v631 = vsub.s32 32, %v630
        %v632 = vshrl.u32 683565275, %v631
        %v633 = vshll.u32 683565275, %v630
        %v634 = vshrl.u32 2475754826, %v631
        %v635 = vor.u32 %v633, %v634
        %v636 = vshll.u32 2475754826, %v630
        %v637 = vshrl.u32 2131351028, %v631
        %v638 = vor.u32 %v636, %v637
        %v639 = vshll.u32 2131351028, %v630
        %v640 = vshrl.u32 2102212464, %v631
        %v641 = vor.u32 %v639, %v640
        %v642 = vshll.u32 2102212464, %v630
        %v643 = vshrl.u32 920167782, %v631
        %v644 = vor.u32 %v642, %v643
        %v645 = vshll.u32 920167782, %v630
        %v646 = vshrl.u32 1326507024, %v631
        %v647 = vor.u32 %v645, %v646
        %vm648 = vcmp.lt.s32.totalorder %v629, 1
        %vm649 = vcmp.lt.s32.totalorder %v629, 2
        %vm650 = vcmp.lt.s32.totalorder %v629, 3
        %vm651 = vcmp.lt.s32.totalorder %v629, 4
        %v652 = vsel %vm648, %v632, %v635
        %v653 = vsel %vm651, %v641, 2102212464
        %v654 = vsel %vm650, %v638, %v653
        %v655 = vsel %vm649, %v652, %v654
        %v656 = vsel %vm648, %v635, %v638
        %v657 = vsel %vm651, %v644, 920167782
        %v658 = vsel %vm650, %v641, %v657
        %v659 = vsel %vm649, %v656, %v658
        %v660 = vsel %vm648, %v638, %v641
        %v661 = vsel %vm651, %v647, 1326507024
        %v662 = vsel %vm650, %v644, %v661
        %v663 = vsel %vm649, %v660, %v662
        %v664 = vshll.u32 %v624, 8
        %v665 = vand.u32 %v664, 65535
        %v666 = vshrl.u32 %v664, 16
        %v667 = vand.u32 %v663, 65535
        %v668 = vshrl.u32 %v663, 16
        %v669 = vmul.u32 %v665, %v667
        %v670 = vmul.u32 %v665, %v668
        %v671 = vmul.u32 %v666, %v667
        %v672 = vmul.u32 %v666, %v668
        %v673 = vshll.u32 %v670, 16
        %v674 = vshrl.u32 %v670, 16
        %v675 = vshll.u32 %v671, 16
        %v676 = vshrl.u32 %v671, 16
        %vm677 = vc.u32 %v669, %v673
        %v678 = vsel %vm677, 1, 0
        %v679 = vadd.s32 %v669, %v673
        %v680 = vadd.s32 %v672, %v678
        %vm681 = vc.u32 %v679, %v675
        %v682 = vsel %vm681, 1, 0
        %v683 = vadd.s32 %v679, %v675
        %v684 = vadd.s32 %v680, %v682
        %v685 = vadd.s32 %v684, %v674
        %v686 = vadd.s32 %v685, %v676
        %v687 = vand.u32 %v664, 65535
        %v688 = vshrl.u32 %v664, 16
        %v689 = vand.u32 %v659, 65535
        %v690 = vshrl.u32 %v659, 16
        %v691 = vmul.u32 %v687, %v689
        %v692 = vmul.u32 %v687, %v690
        %v693 = vmul.u32 %v688, %v689
        %v694 = vmul.u32 %v688, %v690
        %v695 = vshll.u32 %v692, 16
        %v696 = vshrl.u32 %v692, 16
        %v697 = vshll.u32 %v693, 16
        %v698 = vshrl.u32 %v693, 16
        %vm699 = vc.u32 %v691, %v695
        %v700 = vsel %vm699, 1, 0
        %v701 = vadd.s32 %v691, %v695
        %v702 = vadd.s32 %v694, %v700
        %vm703 = vc.u32 %v701, %v697
        %v704 = vsel %vm703, 1, 0
        %v705 = vadd.s32 %v701, %v697
        %v706 = vadd.s32 %v702, %v704
        %v707 = vadd.s32 %v706, %v696
        %v708 = vadd.s32 %v707, %v698
        %v709 = vmul.u32 %v664, %v655
        %v710 = vadd.s32 %v686, %v705
        %vm711 = vc.u32 %v686, %v705
        %v712 = vadd.s32 %v708, 1
        %v713 = vsel %vm711, %v712, %v708
        %v714 = vadd.s32 %v709, %v713
        %v715 = vadd.s32 %v714, 536870912
        %v716 = vshrl.u32 %v715, 30
        %v717 = vshll.u32 %v716, 30
        %v718 = vsub.s32 %v714, %v717
        %vm719 = vcmp.lt.s32.totalorder %v718, 0
        %v720 = vsub.s32 0, %v718
        %v721 = vsel %vm719, %v720, %v718
        %v722 = vclz %v721
        %v723 = vsub.s32 %v722, 2
        %vm724 = vcmp.gt.s32.totalorder 0, %v723
        %v725 = vsel %vm724, 0, %v723
        %v726 = vsub.s32 32, %v725
        %v727 = vshll.u32 %v718, %v725
        %v728 = vshrl.u32 %v710, %v726
        %v729 = vor.u32 %v727, %v728
        %v730 = vsub.s32 4294967266, %v725
        %v731 = vadd.s32 %v730, 127
        %v732 = vshll.u32 %v731, 23
        %v733 = vor.u32 4788187, %v732
        %v734 = vand.u32 2147483647, %v733
        %v736 = vcvt.s32.f32 %v729
        %v737 = vmul.f32 %v736, %v734
        %v738 = vxor.u32 %v737, 2147483648
        %v739 = vsel %vm618, %v738, %v737
        %v740 = vsub.s32 4, %v716
        %v741 = vsel %vm618, %v740, %v716
        %v742 = vsel %vm617, %v304, %v739
        %v743 = vsel %vm617, 0, %v741
        %v744 = vmul.f32 %v742, %v742
        %v745 = vmul.f32 %v744, -0.001358992
        %v746 = vadd.f32 %v745, 0.041655596
        %v747 = vmul.f32 %v744, %v746
        %v748 = vadd.f32 %v747, -0.4999988
        %v749 = vmul.f32 %v744, %v748
        %v750 = vadd.f32 1.0, %v749
        %v751 = vmul.f32 %v742, %v742
        %v752 = vmul.f32 %v751, -0.00019511016
        %v753 = vadd.f32 %v752, 0.008332121
        %v754 = vmul.f32 %v751, %v753
        %v755 = vadd.f32 %v754, -0.16666654
        %v756 = vmul.f32 %v751, %v755
        %v757 = vadd.f32 %v756, 1.0
        %v758 = vmul.f32 %v757, %v742
        %vm759 = vweird.f32 %v304
        %v760 = vadd.s32 %v743, 3
        %v761 = vand.u32 %v760, 3
        %vm762 = vcmp.lt.s32.totalorder %v761, 2
        %vm763 = vcmp.eq.s32.totalorder %v761, 0
        %v764 = vxor.u32 %v758, 2147483648
        %v765 = vsel %vm763, %v750, %v764
        %vm766 = vcmp.eq.s32.totalorder %v761, 2
        %v767 = vxor.u32 %v750, 2147483648
        %v768 = vsel %vm766, %v767, %v758
        %v769 = vsel %vm762, %v765, %v768
        %v770 = vsel %vm759, nan, %v769
        %v771 = vand.u32 2147483647, %v305
        %vm772 = vcmp.le.f32.partialorder %v771, 0.7853982
        %vm773 = vcmp.lt.s32.totalorder %v305, 0
        %v774 = vand.u32 %v305, 2139095040
        %v775 = vshrl.u32 %v774, 23
        %v776 = vsub.s32 %v775, 127
        %v777 = vand.u32 2147483647, %v305
        %v778 = vand.u32 %v777, 8388607
        %v779 = vor.u32 %v778, 8388608
        %v780 = vsub.s32 0, %v779
        %v781 = vadd.s32 %v776, 1
        %vm782 = vcmp.gt.s32.totalorder %v781, 0
        %v783 = vsel %vm782, %v781, 0
        %v784 = vshrl.u32 %v783, 5
        %v785 = vand.u32 %v783, 31
        %v786 = vsub.s32 32, %v785
        %v787 = vshrl.u32 683565275, %v786
        %v788 = vshll.u32 683565275, %v785
        %v789 = vshrl.u32 2475754826, %v786
        %v790 = vor.u32 %v788, %v789
        %v791 = vshll.u32 2475754826, %v785
        %v792 = vshrl.u32 2131351028, %v786
        %v793 = vor.u32 %v791, %v792
        %v794 = vshll.u32 2131351028, %v785
        %v795 = vshrl.u32 2102212464, %v786
        %v796 = vor.u32 %v794, %v795
        %v797 = vshll.u32 2102212464, %v785
        %v798 = vshrl.u32 920167782, %v786
        %v799 = vor.u32 %v797, %v798
        %v800 = vshll.u32 920167782, %v785
        %v801 = vshrl.u32 1326507024, %v786
        %v802 = vor.u32 %v800, %v801
        %vm803 = vcmp.lt.s32.totalorder %v784, 1
        %vm804 = vcmp.lt.s32.totalorder %v784, 2
        %vm805 = vcmp.lt.s32.totalorder %v784, 3
        %vm806 = vcmp.lt.s32.totalorder %v784, 4
        %v807 = vsel %vm803, %v787, %v790
        %v808 = vsel %vm806, %v796, 2102212464
        %v809 = vsel %vm805, %v793, %v808
        %v810 = vsel %vm804, %v807, %v809
        %v811 = vsel %vm803, %v790, %v793
        %v812 = vsel %vm806, %v799, 920167782
        %v813 = vsel %vm805, %v796, %v812
        %v814 = vsel %vm804, %v811, %v813
        %v815 = vsel %vm803, %v793, %v796
        %v816 = vsel %vm806, %v802, 1326507024
        %v817 = vsel %vm805, %v799, %v816
        %v818 = vsel %vm804, %v815, %v817
        %v819 = vshll.u32 %v779, 8
        %v820 = vand.u32 %v819, 65535
        %v821 = vshrl.u32 %v819, 16
        %v822 = vand.u32 %v818, 65535
        %v823 = vshrl.u32 %v818, 16
        %v824 = vmul.u32 %v820, %v822
        %v825 = vmul.u32 %v820, %v823
        %v826 = vmul.u32 %v821, %v822
        %v827 = vmul.u32 %v821, %v823
        %v828 = vshll.u32 %v825, 16
        %v829 = vshrl.u32 %v825, 16
        %v830 = vshll.u32 %v826, 16
        %v831 = vshrl.u32 %v826, 16
        %vm832 = vc.u32 %v824, %v828
        %v833 = vsel %vm832, 1, 0
        %v834 = vadd.s32 %v824, %v828
        %v835 = vadd.s32 %v827, %v833
        %vm836 = vc.u32 %v834, %v830
        %v837 = vsel %vm836, 1, 0
        %v838 = vadd.s32 %v834, %v830
        %v839 = vadd.s32 %v835, %v837
        %v840 = vadd.s32 %v839, %v829
        %v841 = vadd.s32 %v840, %v831
        %v842 = vand.u32 %v819, 65535
        %v843 = vshrl.u32 %v819, 16
        %v844 = vand.u32 %v814, 65535
        %v845 = vshrl.u32 %v814, 16
        %v846 = vmul.u32 %v842, %v844
        %v847 = vmul.u32 %v842, %v845
        %v848 = vmul.u32 %v843, %v844
        %v849 = vmul.u32 %v843, %v845
        %v850 = vshll.u32 %v847, 16
        %v851 = vshrl.u32 %v847, 16
        %v852 = vshll.u32 %v848, 16
        %v853 = vshrl.u32 %v848, 16
        %vm854 = vc.u32 %v846, %v850
        %v855 = vsel %vm854, 1, 0
        %v856 = vadd.s32 %v846, %v850
        %v857 = vadd.s32 %v849, %v855
        %vm858 = vc.u32 %v856, %v852
        %v859 = vsel %vm858, 1, 0
        %v860 = vadd.s32 %v856, %v852
        %v861 = vadd.s32 %v857, %v859
        %v862 = vadd.s32 %v861, %v851
        %v863 = vadd.s32 %v862, %v853
        %v864 = vmul.u32 %v819, %v810
        %v865 = vadd.s32 %v841, %v860
        %vm866 = vc.u32 %v841, %v860
        %v867 = vadd.s32 %v863, 1
        %v868 = vsel %vm866, %v867, %v863
        %v869 = vadd.s32 %v864, %v868
        %v870 = vadd.s32 %v869, 536870912
        %v871 = vshrl.u32 %v870, 30
        %v872 = vshll.u32 %v871, 30
        %v873 = vsub.s32 %v869, %v872
        %vm874 = vcmp.lt.s32.totalorder %v873, 0
        %v875 = vsub.s32 0, %v873
        %v876 = vsel %vm874, %v875, %v873
        %v877 = vclz %v876
        %v878 = vsub.s32 %v877, 2
        %vm879 = vcmp.gt.s32.totalorder 0, %v878
        %v880 = vsel %vm879, 0, %v878
        %v881 = vsub.s32 32, %v880
        %v882 = vshll.u32 %v873, %v880
        %v883 = vshrl.u32 %v865, %v881
        %v884 = vor.u32 %v882, %v883
        %v885 = vsub.s32 4294967266, %v880
        %v886 = vadd.s32 %v885, 127
        %v887 = vshll.u32 %v886, 23
        %v888 = vor.u32 4788187, %v887
        %v889 = vand.u32 2147483647, %v888
        %v891 = vcvt.s32.f32 %v884
        %v892 = vmul.f32 %v891, %v889
        %v893 = vxor.u32 %v892, 2147483648
        %v894 = vsel %vm773, %v893, %v892
        %v895 = vsub.s32 4, %v871
        %v896 = vsel %vm773, %v895, %v871
        %v897 = vsel %vm772, %v305, %v894
        %v898 = vsel %vm772, 0, %v896
        %v899 = vmul.f32 %v897, %v897
        %v900 = vmul.f32 %v899, -0.001358992
        %v901 = vadd.f32 %v900, 0.041655596
        %v902 = vmul.f32 %v899, %v901
        %v903 = vadd.f32 %v902, -0.4999988
        %v904 = vmul.f32 %v899, %v903
        %v905 = vadd.f32 1.0, %v904
        %v906 = vmul.f32 %v897, %v897
        %v907 = vmul.f32 %v906, -0.00019511016
        %v908 = vadd.f32 %v907, 0.008332121
        %v909 = vmul.f32 %v906, %v908
        %v910 = vadd.f32 %v909, -0.16666654
        %v911 = vmul.f32 %v906, %v910
        %v912 = vadd.f32 %v911, 1.0
        %v913 = vmul.f32 %v912, %v897
        %vm914 = vweird.f32 %v305
        %v915 = vadd.s32 %v898, 3
        %v916 = vand.u32 %v915, 3
        %vm917 = vcmp.lt.s32.totalorder %v916, 2
        %vm918 = vcmp.eq.s32.totalorder %v916, 0
        %v919 = vxor.u32 %v913, 2147483648
        %v920 = vsel %vm918, %v905, %v919
        %vm921 = vcmp.eq.s32.totalorder %v916, 2
        %v922 = vxor.u32 %v905, 2147483648
        %v923 = vsel %vm921, %v922, %v913
        %v924 = vsel %vm917, %v920, %v923
        %v925 = vsel %vm914, nan, %v924
        %926 = vst [vmem:[%s231] sm:$0xff] %v460
        %927 = vst [vmem:[%s231 + $0x8] sm:$0xff] %v615
        %928 = vst [vmem:[%s231 + $0x10] sm:$0xff] %v770
        %929 = vst [vmem:[%s231 + $0x18] sm:$0xff] %v925
        %v930 = vld [vmem:[%s245] sm:$0x1]
        %v932 = vperm.slane %v930, 0
        %v934 = vmul.f32 %v932, %v253
        %v935 = vmul.f32 %v932, %v258
        %v936 = vmul.f32 %v932, %v263
        %v937 = vmul.f32 %v932, %v268
        %v938 = vadd.f32 %v934, %v277
        %v939 = vadd.f32 %v935, %v282
        %v940 = vadd.f32 %v936, %v287
        %v941 = vadd.f32 %v937, %v292
        %v942 = vand.u32 2147483647, %v938
        %vm943 = vcmp.le.f32.partialorder %v942, 0.7853982
        %vm944 = vcmp.lt.s32.totalorder %v938, 0
        %v945 = vand.u32 %v938, 2139095040
        %v946 = vshrl.u32 %v945, 23
        %v947 = vsub.s32 %v946, 127
        %v948 = vand.u32 2147483647, %v938
        %v949 = vand.u32 %v948, 8388607
        %v950 = vor.u32 %v949, 8388608
        %v951 = vsub.s32 0, %v950
        %v952 = vadd.s32 %v947, 1
        %vm953 = vcmp.gt.s32.totalorder %v952, 0
        %v954 = vsel %vm953, %v952, 0
        %v955 = vshrl.u32 %v954, 5
        %v956 = vand.u32 %v954, 31
        %v957 = vsub.s32 32, %v956
        %v958 = vshrl.u32 683565275, %v957
        %v959 = vshll.u32 683565275, %v956
        %v960 = vshrl.u32 2475754826, %v957
        %v961 = vor.u32 %v959, %v960
        %v962 = vshll.u32 2475754826, %v956
        %v963 = vshrl.u32 2131351028, %v957
        %v964 = vor.u32 %v962, %v963
        %v965 = vshll.u32 2131351028, %v956
        %v966 = vshrl.u32 2102212464, %v957
        %v967 = vor.u32 %v965, %v966
        %v968 = vshll.u32 2102212464, %v956
        %v969 = vshrl.u32 920167782, %v957
        %v970 = vor.u32 %v968, %v969
        %v971 = vshll.u32 920167782, %v956
        %v972 = vshrl.u32 1326507024, %v957
        %v973 = vor.u32 %v971, %v972
        %vm974 = vcmp.lt.s32.totalorder %v955, 1
        %vm975 = vcmp.lt.s32.totalorder %v955, 2
        %vm976 = vcmp.lt.s32.totalorder %v955, 3
        %vm977 = vcmp.lt.s32.totalorder %v955, 4
        %v978 = vsel %vm974, %v958, %v961
        %v979 = vsel %vm977, %v967, 2102212464
        %v980 = vsel %vm976, %v964, %v979
        %v981 = vsel %vm975, %v978, %v980
        %v982 = vsel %vm974, %v961, %v964
        %v983 = vsel %vm977, %v970, 920167782
        %v984 = vsel %vm976, %v967, %v983
        %v985 = vsel %vm975, %v982, %v984
        %v986 = vsel %vm974, %v964, %v967
        %v987 = vsel %vm977, %v973, 1326507024
        %v988 = vsel %vm976, %v970, %v987
        %v989 = vsel %vm975, %v986, %v988
        %v990 = vshll.u32 %v950, 8
        %v991 = vand.u32 %v990, 65535
        %v992 = vshrl.u32 %v990, 16
        %v993 = vand.u32 %v989, 65535
        %v994 = vshrl.u32 %v989, 16
        %v995 = vmul.u32 %v991, %v993
        %v996 = vmul.u32 %v991, %v994
        %v997 = vmul.u32 %v992, %v993
        %v998 = vmul.u32 %v992, %v994
        %v999 = vshll.u32 %v996, 16
        %v1000 = vshrl.u32 %v996, 16
        %v1001 = vshll.u32 %v997, 16
        %v1002 = vshrl.u32 %v997, 16
        %vm1003 = vc.u32 %v995, %v999
        %v1004 = vsel %vm1003, 1, 0
        %v1005 = vadd.s32 %v995, %v999
        %v1006 = vadd.s32 %v998, %v1004
        %vm1007 = vc.u32 %v1005, %v1001
        %v1008 = vsel %vm1007, 1, 0
        %v1009 = vadd.s32 %v1005, %v1001
        %v1010 = vadd.s32 %v1006, %v1008
        %v1011 = vadd.s32 %v1010, %v1000
        %v1012 = vadd.s32 %v1011, %v1002
        %v1013 = vand.u32 %v990, 65535
        %v1014 = vshrl.u32 %v990, 16
        %v1015 = vand.u32 %v985, 65535
        %v1016 = vshrl.u32 %v985, 16
        %v1017 = vmul.u32 %v1013, %v1015
        %v1018 = vmul.u32 %v1013, %v1016
        %v1019 = vmul.u32 %v1014, %v1015
        %v1020 = vmul.u32 %v1014, %v1016
        %v1021 = vshll.u32 %v1018, 16
        %v1022 = vshrl.u32 %v1018, 16
        %v1023 = vshll.u32 %v1019, 16
        %v1024 = vshrl.u32 %v1019, 16
        %vm1025 = vc.u32 %v1017, %v1021
        %v1026 = vsel %vm1025, 1, 0
        %v1027 = vadd.s32 %v1017, %v1021
        %v1028 = vadd.s32 %v1020, %v1026
        %vm1029 = vc.u32 %v1027, %v1023
        %v1030 = vsel %vm1029, 1, 0
        %v1031 = vadd.s32 %v1027, %v1023
        %v1032 = vadd.s32 %v1028, %v1030
        %v1033 = vadd.s32 %v1032, %v1022
        %v1034 = vadd.s32 %v1033, %v1024
        %v1035 = vmul.u32 %v990, %v981
        %v1036 = vadd.s32 %v1012, %v1031
        %vm1037 = vc.u32 %v1012, %v1031
        %v1038 = vadd.s32 %v1034, 1
        %v1039 = vsel %vm1037, %v1038, %v1034
        %v1040 = vadd.s32 %v1035, %v1039
        %v1041 = vadd.s32 %v1040, 536870912
        %v1042 = vshrl.u32 %v1041, 30
        %v1043 = vshll.u32 %v1042, 30
        %v1044 = vsub.s32 %v1040, %v1043
        %vm1045 = vcmp.lt.s32.totalorder %v1044, 0
        %v1046 = vsub.s32 0, %v1044
        %v1047 = vsel %vm1045, %v1046, %v1044
        %v1048 = vclz %v1047
        %v1049 = vsub.s32 %v1048, 2
        %vm1050 = vcmp.gt.s32.totalorder 0, %v1049
        %v1051 = vsel %vm1050, 0, %v1049
        %v1052 = vsub.s32 32, %v1051
        %v1053 = vshll.u32 %v1044, %v1051
        %v1054 = vshrl.u32 %v1036, %v1052
        %v1055 = vor.u32 %v1053, %v1054
        %v1056 = vsub.s32 4294967266, %v1051
        %v1057 = vadd.s32 %v1056, 127
        %v1058 = vshll.u32 %v1057, 23
        %v1059 = vor.u32 4788187, %v1058
        %v1060 = vand.u32 2147483647, %v1059
        %v1062 = vcvt.s32.f32 %v1055
        %v1063 = vmul.f32 %v1062, %v1060
        %v1064 = vxor.u32 %v1063, 2147483648
        %v1065 = vsel %vm944, %v1064, %v1063
        %v1066 = vsub.s32 4, %v1042
        %v1067 = vsel %vm944, %v1066, %v1042
        %v1068 = vsel %vm943, %v938, %v1065
        %v1069 = vsel %vm943, 0, %v1067
        %v1070 = vmul.f32 %v1068, %v1068
        %v1071 = vmul.f32 %v1070, -0.001358992
        %v1072 = vadd.f32 %v1071, 0.041655596
        %v1073 = vmul.f32 %v1070, %v1072
        %v1074 = vadd.f32 %v1073, -0.4999988
        %v1075 = vmul.f32 %v1070, %v1074
        %v1076 = vadd.f32 1.0, %v1075
        %v1077 = vmul.f32 %v1068, %v1068
        %v1078 = vmul.f32 %v1077, -0.00019511016
        %v1079 = vadd.f32 %v1078, 0.008332121
        %v1080 = vmul.f32 %v1077, %v1079
        %v1081 = vadd.f32 %v1080, -0.16666654
        %v1082 = vmul.f32 %v1077, %v1081
        %v1083 = vadd.f32 %v1082, 1.0
        %v1084 = vmul.f32 %v1083, %v1068
        %vm1085 = vweird.f32 %v938
        %v1086 = vadd.s32 %v1069, 3
        %v1087 = vand.u32 %v1086, 3
        %vm1088 = vcmp.lt.s32.totalorder %v1087, 2
        %vm1089 = vcmp.eq.s32.totalorder %v1087, 0
        %v1090 = vxor.u32 %v1084, 2147483648
        %v1091 = vsel %vm1089, %v1076, %v1090
        %vm1092 = vcmp.eq.s32.totalorder %v1087, 2
        %v1093 = vxor.u32 %v1076, 2147483648
        %v1094 = vsel %vm1092, %v1093, %v1084
        %v1095 = vsel %vm1088, %v1091, %v1094
        %v1096 = vsel %vm1085, nan, %v1095
        %v1097 = vand.u32 2147483647, %v939
        %vm1098 = vcmp.le.f32.partialorder %v1097, 0.7853982
        %vm1099 = vcmp.lt.s32.totalorder %v939, 0
        %v1100 = vand.u32 %v939, 2139095040
        %v1101 = vshrl.u32 %v1100, 23
        %v1102 = vsub.s32 %v1101, 127
        %v1103 = vand.u32 2147483647, %v939
        %v1104 = vand.u32 %v1103, 8388607
        %v1105 = vor.u32 %v1104, 8388608
        %v1106 = vsub.s32 0, %v1105
        %v1107 = vadd.s32 %v1102, 1
        %vm1108 = vcmp.gt.s32.totalorder %v1107, 0
        %v1109 = vsel %vm1108, %v1107, 0
        %v1110 = vshrl.u32 %v1109, 5
        %v1111 = vand.u32 %v1109, 31
        %v1112 = vsub.s32 32, %v1111
        %v1113 = vshrl.u32 683565275, %v1112
        %v1114 = vshll.u32 683565275, %v1111
        %v1115 = vshrl.u32 2475754826, %v1112
        %v1116 = vor.u32 %v1114, %v1115
        %v1117 = vshll.u32 2475754826, %v1111
        %v1118 = vshrl.u32 2131351028, %v1112
        %v1119 = vor.u32 %v1117, %v1118
        %v1120 = vshll.u32 2131351028, %v1111
        %v1121 = vshrl.u32 2102212464, %v1112
        %v1122 = vor.u32 %v1120, %v1121
        %v1123 = vshll.u32 2102212464, %v1111
        %v1124 = vshrl.u32 920167782, %v1112
        %v1125 = vor.u32 %v1123, %v1124
        %v1126 = vshll.u32 920167782, %v1111
        %v1127 = vshrl.u32 1326507024, %v1112
        %v1128 = vor.u32 %v1126, %v1127
        %vm1129 = vcmp.lt.s32.totalorder %v1110, 1
        %vm1130 = vcmp.lt.s32.totalorder %v1110, 2
        %vm1131 = vcmp.lt.s32.totalorder %v1110, 3
        %vm1132 = vcmp.lt.s32.totalorder %v1110, 4
        %v1133 = vsel %vm1129, %v1113, %v1116
        %v1134 = vsel %vm1132, %v1122, 2102212464
        %v1135 = vsel %vm1131, %v1119, %v1134
        %v1136 = vsel %vm1130, %v1133, %v1135
        %v1137 = vsel %vm1129, %v1116, %v1119
        %v1138 = vsel %vm1132, %v1125, 920167782
        %v1139 = vsel %vm1131, %v1122, %v1138
        %v1140 = vsel %vm1130, %v1137, %v1139
        %v1141 = vsel %vm1129, %v1119, %v1122
        %v1142 = vsel %vm1132, %v1128, 1326507024
        %v1143 = vsel %vm1131, %v1125, %v1142
        %v1144 = vsel %vm1130, %v1141, %v1143
        %v1145 = vshll.u32 %v1105, 8
        %v1146 = vand.u32 %v1145, 65535
        %v1147 = vshrl.u32 %v1145, 16
        %v1148 = vand.u32 %v1144, 65535
        %v1149 = vshrl.u32 %v1144, 16
        %v1150 = vmul.u32 %v1146, %v1148
        %v1151 = vmul.u32 %v1146, %v1149
        %v1152 = vmul.u32 %v1147, %v1148
        %v1153 = vmul.u32 %v1147, %v1149
        %v1154 = vshll.u32 %v1151, 16
        %v1155 = vshrl.u32 %v1151, 16
        %v1156 = vshll.u32 %v1152, 16
        %v1157 = vshrl.u32 %v1152, 16
        %vm1158 = vc.u32 %v1150, %v1154
        %v1159 = vsel %vm1158, 1, 0
        %v1160 = vadd.s32 %v1150, %v1154
        %v1161 = vadd.s32 %v1153, %v1159
        %vm1162 = vc.u32 %v1160, %v1156
        %v1163 = vsel %vm1162, 1, 0
        %v1164 = vadd.s32 %v1160, %v1156
        %v1165 = vadd.s32 %v1161, %v1163
        %v1166 = vadd.s32 %v1165, %v1155
        %v1167 = vadd.s32 %v1166, %v1157
        %v1168 = vand.u32 %v1145, 65535
        %v1169 = vshrl.u32 %v1145, 16
        %v1170 = vand.u32 %v1140, 65535
        %v1171 = vshrl.u32 %v1140, 16
        %v1172 = vmul.u32 %v1168, %v1170
        %v1173 = vmul.u32 %v1168, %v1171
        %v1174 = vmul.u32 %v1169, %v1170
        %v1175 = vmul.u32 %v1169, %v1171
        %v1176 = vshll.u32 %v1173, 16
        %v1177 = vshrl.u32 %v1173, 16
        %v1178 = vshll.u32 %v1174, 16
        %v1179 = vshrl.u32 %v1174, 16
        %vm1180 = vc.u32 %v1172, %v1176
        %v1181 = vsel %vm1180, 1, 0
        %v1182 = vadd.s32 %v1172, %v1176
        %v1183 = vadd.s32 %v1175, %v1181
        %vm1184 = vc.u32 %v1182, %v1178
        %v1185 = vsel %vm1184, 1, 0
        %v1186 = vadd.s32 %v1182, %v1178
        %v1187 = vadd.s32 %v1183, %v1185
        %v1188 = vadd.s32 %v1187, %v1177
        %v1189 = vadd.s32 %v1188, %v1179
        %v1190 = vmul.u32 %v1145, %v1136
        %v1191 = vadd.s32 %v1167, %v1186
        %vm1192 = vc.u32 %v1167, %v1186
        %v1193 = vadd.s32 %v1189, 1
        %v1194 = vsel %vm1192, %v1193, %v1189
        %v1195 = vadd.s32 %v1190, %v1194
        %v1196 = vadd.s32 %v1195, 536870912
        %v1197 = vshrl.u32 %v1196, 30
        %v1198 = vshll.u32 %v1197, 30
        %v1199 = vsub.s32 %v1195, %v1198
        %vm1200 = vcmp.lt.s32.totalorder %v1199, 0
        %v1201 = vsub.s32 0, %v1199
        %v1202 = vsel %vm1200, %v1201, %v1199
        %v1203 = vclz %v1202
        %v1204 = vsub.s32 %v1203, 2
        %vm1205 = vcmp.gt.s32.totalorder 0, %v1204
        %v1206 = vsel %vm1205, 0, %v1204
        %v1207 = vsub.s32 32, %v1206
        %v1208 = vshll.u32 %v1199, %v1206
        %v1209 = vshrl.u32 %v1191, %v1207
        %v1210 = vor.u32 %v1208, %v1209
        %v1211 = vsub.s32 4294967266, %v1206
        %v1212 = vadd.s32 %v1211, 127
        %v1213 = vshll.u32 %v1212, 23
        %v1214 = vor.u32 4788187, %v1213
        %v1215 = vand.u32 2147483647, %v1214
        %v1217 = vcvt.s32.f32 %v1210
        %v1218 = vmul.f32 %v1217, %v1215
        %v1219 = vxor.u32 %v1218, 2147483648
        %v1220 = vsel %vm1099, %v1219, %v1218
        %v1221 = vsub.s32 4, %v1197
        %v1222 = vsel %vm1099, %v1221, %v1197
        %v1223 = vsel %vm1098, %v939, %v1220
        %v1224 = vsel %vm1098, 0, %v1222
        %v1225 = vmul.f32 %v1223, %v1223
        %v1226 = vmul.f32 %v1225, -0.001358992
        %v1227 = vadd.f32 %v1226, 0.041655596
        %v1228 = vmul.f32 %v1225, %v1227
        %v1229 = vadd.f32 %v1228, -0.4999988
        %v1230 = vmul.f32 %v1225, %v1229
        %v1231 = vadd.f32 1.0, %v1230
        %v1232 = vmul.f32 %v1223, %v1223
        %v1233 = vmul.f32 %v1232, -0.00019511016
        %v1234 = vadd.f32 %v1233, 0.008332121
        %v1235 = vmul.f32 %v1232, %v1234
        %v1236 = vadd.f32 %v1235, -0.16666654
        %v1237 = vmul.f32 %v1232, %v1236
        %v1238 = vadd.f32 %v1237, 1.0
        %v1239 = vmul.f32 %v1238, %v1223
        %vm1240 = vweird.f32 %v939
        %v1241 = vadd.s32 %v1224, 3
        %v1242 = vand.u32 %v1241, 3
        %vm1243 = vcmp.lt.s32.totalorder %v1242, 2
        %vm1244 = vcmp.eq.s32.totalorder %v1242, 0
        %v1245 = vxor.u32 %v1239, 2147483648
        %v1246 = vsel %vm1244, %v1231, %v1245
        %vm1247 = vcmp.eq.s32.totalorder %v1242, 2
        %v1248 = vxor.u32 %v1231, 2147483648
        %v1249 = vsel %vm1247, %v1248, %v1239
        %v1250 = vsel %vm1243, %v1246, %v1249
        %v1251 = vsel %vm1240, nan, %v1250
        %v1252 = vand.u32 2147483647, %v940
        %vm1253 = vcmp.le.f32.partialorder %v1252, 0.7853982
        %vm1254 = vcmp.lt.s32.totalorder %v940, 0
        %v1255 = vand.u32 %v940, 2139095040
        %v1256 = vshrl.u32 %v1255, 23
        %v1257 = vsub.s32 %v1256, 127
        %v1258 = vand.u32 2147483647, %v940
        %v1259 = vand.u32 %v1258, 8388607
        %v1260 = vor.u32 %v1259, 8388608
        %v1261 = vsub.s32 0, %v1260
        %v1262 = vadd.s32 %v1257, 1
        %vm1263 = vcmp.gt.s32.totalorder %v1262, 0
        %v1264 = vsel %vm1263, %v1262, 0
        %v1265 = vshrl.u32 %v1264, 5
        %v1266 = vand.u32 %v1264, 31
        %v1267 = vsub.s32 32, %v1266
        %v1268 = vshrl.u32 683565275, %v1267
        %v1269 = vshll.u32 683565275, %v1266
        %v1270 = vshrl.u32 2475754826, %v1267
        %v1271 = vor.u32 %v1269, %v1270
        %v1272 = vshll.u32 2475754826, %v1266
        %v1273 = vshrl.u32 2131351028, %v1267
        %v1274 = vor.u32 %v1272, %v1273
        %v1275 = vshll.u32 2131351028, %v1266
        %v1276 = vshrl.u32 2102212464, %v1267
        %v1277 = vor.u32 %v1275, %v1276
        %v1278 = vshll.u32 2102212464, %v1266
        %v1279 = vshrl.u32 920167782, %v1267
        %v1280 = vor.u32 %v1278, %v1279
        %v1281 = vshll.u32 920167782, %v1266
        %v1282 = vshrl.u32 1326507024, %v1267
        %v1283 = vor.u32 %v1281, %v1282
        %vm1284 = vcmp.lt.s32.totalorder %v1265, 1
        %vm1285 = vcmp.lt.s32.totalorder %v1265, 2
        %vm1286 = vcmp.lt.s32.totalorder %v1265, 3
        %vm1287 = vcmp.lt.s32.totalorder %v1265, 4
        %v1288 = vsel %vm1284, %v1268, %v1271
        %v1289 = vsel %vm1287, %v1277, 2102212464
        %v1290 = vsel %vm1286, %v1274, %v1289
        %v1291 = vsel %vm1285, %v1288, %v1290
        %v1292 = vsel %vm1284, %v1271, %v1274
        %v1293 = vsel %vm1287, %v1280, 920167782
        %v1294 = vsel %vm1286, %v1277, %v1293
        %v1295 = vsel %vm1285, %v1292, %v1294
        %v1296 = vsel %vm1284, %v1274, %v1277
        %v1297 = vsel %vm1287, %v1283, 1326507024
        %v1298 = vsel %vm1286, %v1280, %v1297
        %v1299 = vsel %vm1285, %v1296, %v1298
        %v1300 = vshll.u32 %v1260, 8
        %v1301 = vand.u32 %v1300, 65535
        %v1302 = vshrl.u32 %v1300, 16
        %v1303 = vand.u32 %v1299, 65535
        %v1304 = vshrl.u32 %v1299, 16
        %v1305 = vmul.u32 %v1301, %v1303
        %v1306 = vmul.u32 %v1301, %v1304
        %v1307 = vmul.u32 %v1302, %v1303
        %v1308 = vmul.u32 %v1302, %v1304
        %v1309 = vshll.u32 %v1306, 16
        %v1310 = vshrl.u32 %v1306, 16
        %v1311 = vshll.u32 %v1307, 16
        %v1312 = vshrl.u32 %v1307, 16
        %vm1313 = vc.u32 %v1305, %v1309
        %v1314 = vsel %vm1313, 1, 0
        %v1315 = vadd.s32 %v1305, %v1309
        %v1316 = vadd.s32 %v1308, %v1314
        %vm1317 = vc.u32 %v1315, %v1311
        %v1318 = vsel %vm1317, 1, 0
        %v1319 = vadd.s32 %v1315, %v1311
        %v1320 = vadd.s32 %v1316, %v1318
        %v1321 = vadd.s32 %v1320, %v1310
        %v1322 = vadd.s32 %v1321, %v1312
        %v1323 = vand.u32 %v1300, 65535
        %v1324 = vshrl.u32 %v1300, 16
        %v1325 = vand.u32 %v1295, 65535
        %v1326 = vshrl.u32 %v1295, 16
        %v1327 = vmul.u32 %v1323, %v1325
        %v1328 = vmul.u32 %v1323, %v1326
        %v1329 = vmul.u32 %v1324, %v1325
        %v1330 = vmul.u32 %v1324, %v1326
        %v1331 = vshll.u32 %v1328, 16
        %v1332 = vshrl.u32 %v1328, 16
        %v1333 = vshll.u32 %v1329, 16
        %v1334 = vshrl.u32 %v1329, 16
        %vm1335 = vc.u32 %v1327, %v1331
        %v1336 = vsel %vm1335, 1, 0
        %v1337 = vadd.s32 %v1327, %v1331
        %v1338 = vadd.s32 %v1330, %v1336
        %vm1339 = vc.u32 %v1337, %v1333
        %v1340 = vsel %vm1339, 1, 0
        %v1341 = vadd.s32 %v1337, %v1333
        %v1342 = vadd.s32 %v1338, %v1340
        %v1343 = vadd.s32 %v1342, %v1332
        %v1344 = vadd.s32 %v1343, %v1334
        %v1345 = vmul.u32 %v1300, %v1291
        %v1346 = vadd.s32 %v1322, %v1341
        %vm1347 = vc.u32 %v1322, %v1341
        %v1348 = vadd.s32 %v1344, 1
        %v1349 = vsel %vm1347, %v1348, %v1344
        %v1350 = vadd.s32 %v1345, %v1349
        %v1351 = vadd.s32 %v1350, 536870912
        %v1352 = vshrl.u32 %v1351, 30
        %v1353 = vshll.u32 %v1352, 30
        %v1354 = vsub.s32 %v1350, %v1353
        %vm1355 = vcmp.lt.s32.totalorder %v1354, 0
        %v1356 = vsub.s32 0, %v1354
        %v1357 = vsel %vm1355, %v1356, %v1354
        %v1358 = vclz %v1357
        %v1359 = vsub.s32 %v1358, 2
        %vm1360 = vcmp.gt.s32.totalorder 0, %v1359
        %v1361 = vsel %vm1360, 0, %v1359
        %v1362 = vsub.s32 32, %v1361
        %v1363 = vshll.u32 %v1354, %v1361
        %v1364 = vshrl.u32 %v1346, %v1362
        %v1365 = vor.u32 %v1363, %v1364
        %v1366 = vsub.s32 4294967266, %v1361
        %v1367 = vadd.s32 %v1366, 127
        %v1368 = vshll.u32 %v1367, 23
        %v1369 = vor.u32 4788187, %v1368
        %v1370 = vand.u32 2147483647, %v1369
        %v1372 = vcvt.s32.f32 %v1365
        %v1373 = vmul.f32 %v1372, %v1370
        %v1374 = vxor.u32 %v1373, 2147483648
        %v1375 = vsel %vm1254, %v1374, %v1373
        %v1376 = vsub.s32 4, %v1352
        %v1377 = vsel %vm1254, %v1376, %v1352
        %v1378 = vsel %vm1253, %v940, %v1375
        %v1379 = vsel %vm1253, 0, %v1377
        %v1380 = vmul.f32 %v1378, %v1378
        %v1381 = vmul.f32 %v1380, -0.001358992
        %v1382 = vadd.f32 %v1381, 0.041655596
        %v1383 = vmul.f32 %v1380, %v1382
        %v1384 = vadd.f32 %v1383, -0.4999988
        %v1385 = vmul.f32 %v1380, %v1384
        %v1386 = vadd.f32 1.0, %v1385
        %v1387 = vmul.f32 %v1378, %v1378
        %v1388 = vmul.f32 %v1387, -0.00019511016
        %v1389 = vadd.f32 %v1388, 0.008332121
        %v1390 = vmul.f32 %v1387, %v1389
        %v1391 = vadd.f32 %v1390, -0.16666654
        %v1392 = vmul.f32 %v1387, %v1391
        %v1393 = vadd.f32 %v1392, 1.0
        %v1394 = vmul.f32 %v1393, %v1378
        %vm1395 = vweird.f32 %v940
        %v1396 = vadd.s32 %v1379, 3
        %v1397 = vand.u32 %v1396, 3
        %vm1398 = vcmp.lt.s32.totalorder %v1397, 2
        %vm1399 = vcmp.eq.s32.totalorder %v1397, 0
        %v1400 = vxor.u32 %v1394, 2147483648
        %v1401 = vsel %vm1399, %v1386, %v1400
        %vm1402 = vcmp.eq.s32.totalorder %v1397, 2
        %v1403 = vxor.u32 %v1386, 2147483648
        %v1404 = vsel %vm1402, %v1403, %v1394
        %v1405 = vsel %vm1398, %v1401, %v1404
        %v1406 = vsel %vm1395, nan, %v1405
        %v1407 = vand.u32 2147483647, %v941
        %vm1408 = vcmp.le.f32.partialorder %v1407, 0.7853982
        %vm1409 = vcmp.lt.s32.totalorder %v941, 0
        %v1410 = vand.u32 %v941, 2139095040
        %v1411 = vshrl.u32 %v1410, 23
        %v1412 = vsub.s32 %v1411, 127
        %v1413 = vand.u32 2147483647, %v941
        %v1414 = vand.u32 %v1413, 8388607
        %v1415 = vor.u32 %v1414, 8388608
        %v1416 = vsub.s32 0, %v1415
        %v1417 = vadd.s32 %v1412, 1
        %vm1418 = vcmp.gt.s32.totalorder %v1417, 0
        %v1419 = vsel %vm1418, %v1417, 0
        %v1420 = vshrl.u32 %v1419, 5
        %v1421 = vand.u32 %v1419, 31
        %v1422 = vsub.s32 32, %v1421
        %v1423 = vshrl.u32 683565275, %v1422
        %v1424 = vshll.u32 683565275, %v1421
        %v1425 = vshrl.u32 2475754826, %v1422
        %v1426 = vor.u32 %v1424, %v1425
        %v1427 = vshll.u32 2475754826, %v1421
        %v1428 = vshrl.u32 2131351028, %v1422
        %v1429 = vor.u32 %v1427, %v1428
        %v1430 = vshll.u32 2131351028, %v1421
        %v1431 = vshrl.u32 2102212464, %v1422
        %v1432 = vor.u32 %v1430, %v1431
        %v1433 = vshll.u32 2102212464, %v1421
        %v1434 = vshrl.u32 920167782, %v1422
        %v1435 = vor.u32 %v1433, %v1434
        %v1436 = vshll.u32 920167782, %v1421
        %v1437 = vshrl.u32 1326507024, %v1422
        %v1438 = vor.u32 %v1436, %v1437
        %vm1439 = vcmp.lt.s32.totalorder %v1420, 1
        %vm1440 = vcmp.lt.s32.totalorder %v1420, 2
        %vm1441 = vcmp.lt.s32.totalorder %v1420, 3
        %vm1442 = vcmp.lt.s32.totalorder %v1420, 4
        %v1443 = vsel %vm1439, %v1423, %v1426
        %v1444 = vsel %vm1442, %v1432, 2102212464
        %v1445 = vsel %vm1441, %v1429, %v1444
        %v1446 = vsel %vm1440, %v1443, %v1445
        %v1447 = vsel %vm1439, %v1426, %v1429
        %v1448 = vsel %vm1442, %v1435, 920167782
        %v1449 = vsel %vm1441, %v1432, %v1448
        %v1450 = vsel %vm1440, %v1447, %v1449
        %v1451 = vsel %vm1439, %v1429, %v1432
        %v1452 = vsel %vm1442, %v1438, 1326507024
        %v1453 = vsel %vm1441, %v1435, %v1452
        %v1454 = vsel %vm1440, %v1451, %v1453
        %v1455 = vshll.u32 %v1415, 8
        %v1456 = vand.u32 %v1455, 65535
        %v1457 = vshrl.u32 %v1455, 16
        %v1458 = vand.u32 %v1454, 65535
        %v1459 = vshrl.u32 %v1454, 16
        %v1460 = vmul.u32 %v1456, %v1458
        %v1461 = vmul.u32 %v1456, %v1459
        %v1462 = vmul.u32 %v1457, %v1458
        %v1463 = vmul.u32 %v1457, %v1459
        %v1464 = vshll.u32 %v1461, 16
        %v1465 = vshrl.u32 %v1461, 16
        %v1466 = vshll.u32 %v1462, 16
        %v1467 = vshrl.u32 %v1462, 16
        %vm1468 = vc.u32 %v1460, %v1464
        %v1469 = vsel %vm1468, 1, 0
        %v1470 = vadd.s32 %v1460, %v1464
        %v1471 = vadd.s32 %v1463, %v1469
        %vm1472 = vc.u32 %v1470, %v1466
        %v1473 = vsel %vm1472, 1, 0
        %v1474 = vadd.s32 %v1470, %v1466
        %v1475 = vadd.s32 %v1471, %v1473
        %v1476 = vadd.s32 %v1475, %v1465
        %v1477 = vadd.s32 %v1476, %v1467
        %v1478 = vand.u32 %v1455, 65535
        %v1479 = vshrl.u32 %v1455, 16
        %v1480 = vand.u32 %v1450, 65535
        %v1481 = vshrl.u32 %v1450, 16
        %v1482 = vmul.u32 %v1478, %v1480
        %v1483 = vmul.u32 %v1478, %v1481
        %v1484 = vmul.u32 %v1479, %v1480
        %v1485 = vmul.u32 %v1479, %v1481
        %v1486 = vshll.u32 %v1483, 16
        %v1487 = vshrl.u32 %v1483, 16
        %v1488 = vshll.u32 %v1484, 16
        %v1489 = vshrl.u32 %v1484, 16
        %vm1490 = vc.u32 %v1482, %v1486
        %v1491 = vsel %vm1490, 1, 0
        %v1492 = vadd.s32 %v1482, %v1486
        %v1493 = vadd.s32 %v1485, %v1491
        %vm1494 = vc.u32 %v1492, %v1488
        %v1495 = vsel %vm1494, 1, 0
        %v1496 = vadd.s32 %v1492, %v1488
        %v1497 = vadd.s32 %v1493, %v1495
        %v1498 = vadd.s32 %v1497, %v1487
        %v1499 = vadd.s32 %v1498, %v1489
        %v1500 = vmul.u32 %v1455, %v1446
        %v1501 = vadd.s32 %v1477, %v1496
        %vm1502 = vc.u32 %v1477, %v1496
        %v1503 = vadd.s32 %v1499, 1
        %v1504 = vsel %vm1502, %v1503, %v1499
        %v1505 = vadd.s32 %v1500, %v1504
        %v1506 = vadd.s32 %v1505, 536870912
        %v1507 = vshrl.u32 %v1506, 30
        %v1508 = vshll.u32 %v1507, 30
        %v1509 = vsub.s32 %v1505, %v1508
        %vm1510 = vcmp.lt.s32.totalorder %v1509, 0
        %v1511 = vsub.s32 0, %v1509
        %v1512 = vsel %vm1510, %v1511, %v1509
        %v1513 = vclz %v1512
        %v1514 = vsub.s32 %v1513, 2
        %vm1515 = vcmp.gt.s32.totalorder 0, %v1514
        %v1516 = vsel %vm1515, 0, %v1514
        %v1517 = vsub.s32 32, %v1516
        %v1518 = vshll.u32 %v1509, %v1516
        %v1519 = vshrl.u32 %v1501, %v1517
        %v1520 = vor.u32 %v1518, %v1519
        %v1521 = vsub.s32 4294967266, %v1516
        %v1522 = vadd.s32 %v1521, 127
        %v1523 = vshll.u32 %v1522, 23
        %v1524 = vor.u32 4788187, %v1523
        %v1525 = vand.u32 2147483647, %v1524
        %v1527 = vcvt.s32.f32 %v1520
        %v1528 = vmul.f32 %v1527, %v1525
        %v1529 = vxor.u32 %v1528, 2147483648
        %v1530 = vsel %vm1409, %v1529, %v1528
        %v1531 = vsub.s32 4, %v1507
        %v1532 = vsel %vm1409, %v1531, %v1507
        %v1533 = vsel %vm1408, %v941, %v1530
        %v1534 = vsel %vm1408, 0, %v1532
        %v1535 = vmul.f32 %v1533, %v1533
        %v1536 = vmul.f32 %v1535, -0.001358992
        %v1537 = vadd.f32 %v1536, 0.041655596
        %v1538 = vmul.f32 %v1535, %v1537
        %v1539 = vadd.f32 %v1538, -0.4999988
        %v1540 = vmul.f32 %v1535, %v1539
        %v1541 = vadd.f32 1.0, %v1540
        %v1542 = vmul.f32 %v1533, %v1533
        %v1543 = vmul.f32 %v1542, -0.00019511016
        %v1544 = vadd.f32 %v1543, 0.008332121
        %v1545 = vmul.f32 %v1542, %v1544
        %v1546 = vadd.f32 %v1545, -0.16666654
        %v1547 = vmul.f32 %v1542, %v1546
        %v1548 = vadd.f32 %v1547, 1.0
        %v1549 = vmul.f32 %v1548, %v1533
        %vm1550 = vweird.f32 %v941
        %v1551 = vadd.s32 %v1534, 3
        %v1552 = vand.u32 %v1551, 3
        %vm1553 = vcmp.lt.s32.totalorder %v1552, 2
        %vm1554 = vcmp.eq.s32.totalorder %v1552, 0
        %v1555 = vxor.u32 %v1549, 2147483648
        %v1556 = vsel %vm1554, %v1541, %v1555
        %vm1557 = vcmp.eq.s32.totalorder %v1552, 2
        %v1558 = vxor.u32 %v1541, 2147483648
        %v1559 = vsel %vm1557, %v1558, %v1549
        %v1560 = vsel %vm1553, %v1556, %v1559
        %v1561 = vsel %vm1550, nan, %v1560
        %1562 = vst [vmem:[%s231 + $0x20] sm:$0xff] %v1096
        %1563 = vst [vmem:[%s231 + $0x28] sm:$0xff] %v1251
        %1564 = vst [vmem:[%s231 + $0x30] sm:$0xff] %v1406
        %1565 = vst [vmem:[%s231 + $0x38] sm:$0xff] %v1561
        %s1566 = sand.u32 %s138, 1
        %s1567 = scalar_lea.sflag [#allocation3], %s1566
        %s1568 = sand.u32 %s138, 1
        %s1569 = smul.addr %s1568, 64
        %s1570 = scalar_lea.vmem [#allocation2], %s1569
        // Predicated region
        $region37: #{tpu_custom_call.1} parent=35 // pred_check
          %p1571 = pneg %p148
        $region38: #{tpu_custom_call.1} parent=35 // pred_check_branch
          %1573 = sbr.rel (%p1571) target = $region40
        $region39: #{tpu_custom_call.1} parent=35 // pred_region
          %1575 = vsyncadd %s1567, 0
          %s1576 = smul.addr %s22, 16
          %s1577 = sadd.s32 %s23, %s1576
          %s1578 = smul.addr %s1577, 8
          %s1579 = scalar_lea.hbm %s4, %s1578
          %s1580 = sshll.u32 %s1570, 4
          %s1581 = int_to_ptr.vmem [resolvable:$true] %s1580
          %s1582 = sshll.u32 %s1579, 4
          %s1583 = int_to_ptr.hbm [resolvable:$true] %s1582
          %1588 = dma.vmem_to_hbm [thread:$0]  %s1581, 1024, %s1583, %s1567, 128, 256, 8
        $region40: #{tpu_custom_call.1} parent=35 // pred_fallthru
          _
      $region36: #{tpu_custom_call.1} parent=5 // pred_fallthru
        _
      %p1589 = scmp.le.s32.totalorder 2, %s13
      // Predicated region
      $region41: #{tpu_custom_call.1} parent=5 // pred_check
        %p1590 = pneg %p1589
      $region42: #{tpu_custom_call.1} parent=5 // pred_check_branch
        %1592 = sbr.rel (%p1590) target = $region44
      $region43: #{tpu_custom_call.1} parent=5 // pred_region
        %s1593 = ssub.s32 %s13, 2
        // Predicated region
        $region45: #{tpu_custom_call.1} parent=43 // pred_check
          %p1594 = pneg %p154
        $region46: #{tpu_custom_call.1} parent=43 // pred_check_branch
          %1596 = sbr.rel (%p1594) target = $region48
        $region47: #{tpu_custom_call.1} parent=43 // pred_region
          %s1597 = sand.u32 %s139, 1
          %s1598 = scalar_lea.sflag [#allocation3], %s1597
          %s1599 = sand.u32 %s139, 1
          %s1600 = smul.addr %s1599, 64
          %s1601 = scalar_lea.vmem [#allocation2], %s1600
          %1603 = dma.done %s1598, 1024
        $region48: #{tpu_custom_call.1} parent=43 // pred_fallthru
          _
      $region44: #{tpu_custom_call.1} parent=5 // pred_fallthru
        _
    $region6: #{tpu_custom_call.1} parent=1 // loop_footer
      %s17 = sadd.s32 1, %s13
    $region7: #{tpu_custom_call.1} parent=1 // loop_footer_branch
      %12 = sbr.rel target = $region3
    $region8: #{tpu_custom_call.1} parent=1 // loop_exit
      _
    %1604 = vsyncpa [#allocation3], 1
    %s1605 = scalar_lea.sflag [#allocation3], 1
    %1606 = vsyncpa %s1605, 1

</llo_original>
